<compile_context>
chip_gen: v6e
topology: v6e:2x2x1
jax: 0.10.0
libtpu: 0.0.40
codegen_flags: <defaults>
</compile_context>

<pallas_src>
import jax
import jax.numpy as jnp
from jax.experimental import pallas as pl
from jax.experimental.pallas import tpu as pltpu

IN_FEATURES = 64 * 12   # 768
HIDDEN = 256
OUT_FEATURES = 1
TILE_B_MAX = 2048       # batch-tile cap (multiple of 128); ~13 MiB double-buffered VMEM
TARGET_TILES = 4        # aim for >= 4 grid steps so pipelining / megacore engage


def chess_mlp_kernel(x_ref, w1_ref, b1_ref, w2_ref, b2_ref, o_ref):
    # Cast the f32 activation tile to bf16 just before the MXU dot (keeps the HBM
    # x stream a single f32 pass; no wrapper-side cast/pad materialization).
    x_bf = x_ref[...].astype(jnp.bfloat16)

    # fc1: (TILE_B, 768) bf16 @ (768, 256) bf16 on the MXU, f32 accumulate.
    h = jnp.dot(x_bf, w1_ref[...], preferred_element_type=jnp.float32)
    h = h + b1_ref[...]                              # (1, 256) broadcast, f32

    # Numerically stable sigmoid: exp argument is always <= 0, so no overflow even
    # for garbage rows in a ragged last block. Reciprocal of [1, 2] runs on the EUP.
    pos = h >= 0.0
    z = jnp.exp(jnp.where(pos, -h, h))               # z in (0, 1]
    inv = pl.reciprocal(1.0 + z, approx=True)
    s = jnp.where(pos, inv, z * inv)                 # sigmoid(h)

    # fc2 (256 -> 1): VPU multiply + lane reduction (XLU), narrow (TILE_B, 1) output.
    out = jnp.sum(s * w2_ref[...], axis=-1, keepdims=True)

    # b2 is a scalar living in SMEM.
    o_ref[...] = out + b2_ref[0, 0]


def chess_model_forward(x, w1, b1, w2, b2):
    """x: any shape flattening to (-1, 768); returns (B, 1) float32."""
    x2d = x.reshape(-1, IN_FEATURES).astype(jnp.float32)   # no-op cast if already f32
    B = x2d.shape[0]

    # Batch tile: multiple of 128, sized so we get ~TARGET_TILES grid steps (DMA/compute
    # overlap + both v7x TensorCores busy), capped at TILE_B_MAX for VMEM. The last
    # block may be ragged; Pallas masks its writeback, so no explicit padding of x.
    tile_b = max(128, min(TILE_B_MAX, pl.cdiv(pl.cdiv(B, TARGET_TILES), 128) * 128))
    n_tiles = pl.cdiv(B, tile_b)

    # Resident weights: fc1 weight in bf16 (384 KiB), biases / fc2 row in f32.
    w1_bf = w1.astype(jnp.bfloat16)
    b1_f = b1.reshape(1, HIDDEN).astype(jnp.float32)
    w2_row = w2.reshape(OUT_FEATURES, HIDDEN).astype(jnp.float32)   # (1, 256)
    b2_smem = b2.reshape(1, 1).astype(jnp.float32)

    cost = pl.CostEstimate(
        flops=2 * B * IN_FEATURES * HIDDEN + 2 * B * HIDDEN,
        transcendentals=B * HIDDEN,
        bytes_accessed=(B * IN_FEATURES * 4          # x stream (f32, single pass)
                        + IN_FEATURES * HIDDEN * 2   # w1 (bf16, resident)
                        + HIDDEN * 4                 # b1
                        + HIDDEN * 4 + 4             # w2 row, b2
                        + B * OUT_FEATURES * 4),     # narrow (B, 1) output
    )

    grid_spec = pltpu.PrefetchScalarGridSpec(
        num_scalar_prefetch=0,
        grid=(n_tiles,),
        in_specs=[
            # x: streamed per batch tile (double-buffered by the pipeline).
            pl.BlockSpec((tile_b, IN_FEATURES), lambda i: (i, 0)),
            # Weights / biases: same block every step -> stay resident in VMEM.
            pl.BlockSpec((IN_FEATURES, HIDDEN), lambda i: (0, 0)),
            pl.BlockSpec((1, HIDDEN), lambda i: (0, 0)),
            pl.BlockSpec((OUT_FEATURES, HIDDEN), lambda i: (0, 0)),
            # b2: a single f32 scalar in SMEM.
            pl.BlockSpec(memory_space=pltpu.MemorySpace.SMEM),
        ],
        out_specs=pl.BlockSpec((tile_b, OUT_FEATURES), lambda i: (i, 0)),
    )

    out = pl.pallas_call(
        chess_mlp_kernel,
        out_shape=jax.ShapeDtypeStruct((B, OUT_FEATURES), jnp.float32),
        grid_spec=grid_spec,
        compiler_params=pltpu.CompilerParams(
            # Batch tiles are independent -> shard across v7x's two TensorCores.
            dimension_semantics=("parallel",),
            # Raise the scoped-VMEM cap so the 2048-row double-buffered f32 x tile
            # (~13 MiB) fits on v5e (16 MiB default) with headroom; 32 MiB is still
            # comfortably under v7x's 64 MiB physical VMEM.
            vmem_limit_bytes=32 * 1024 * 1024,
        ),
        cost_estimate=cost,
    )(x2d, w1_bf, b1_f, w2_row, b2_smem)

    return out


def init_params(key):
    """Deterministic synthetic params matching nn.Linear shapes.

    PyTorch stores Linear weight as (out, in); we keep them pre-transposed
    as (in, out). Init mimics PyTorch's uniform(-1/sqrt(in), 1/sqrt(in)).
    """
    k1, k2, k3, k4 = jax.random.split(key, 4)
    bound1 = 1.0 / jnp.sqrt(jnp.float32(IN_FEATURES))
    bound2 = 1.0 / jnp.sqrt(jnp.float32(HIDDEN))
    w1 = jax.random.uniform(k1, (IN_FEATURES, HIDDEN), jnp.float32, -bound1, bound1)
    b1 = jax.random.uniform(k2, (1, HIDDEN), jnp.float32, -bound1, bound1)
    w2 = jax.random.uniform(k3, (HIDDEN, OUT_FEATURES), jnp.float32, -bound2, bound2)
    b2 = jax.random.uniform(k4, (1, OUT_FEATURES), jnp.float32, -bound2, bound2)
    return w1, b1, w2, b2


if __name__ == "__main__":
    key = jax.random.PRNGKey(0)
    kx, kp = jax.random.split(key)

    # Chess-board style input: batch=2, 12 piece planes, 8x8 board -> flattens to 768.
    x = jax.random.normal(kx, (2, 12, 8, 8), dtype=jnp.float32)
    w1, b1, w2, b2 = init_params(kp)

    out = chess_model_forward(x, w1, b1, w2, b2)
    out = jax.block_until_ready(out)

    # Cross-check against plain-JAX f32 reference (kernel uses bf16 fc1 operands and
    # an approx reciprocal in the sigmoid, so the tolerance is slightly loosened).
    x2d = x.reshape(-1, IN_FEATURES)
    ref = jax.nn.sigmoid(x2d @ w1 + b1) @ w2 + b2
    assert out.shape == (2, 1), out.shape
    assert jnp.allclose(out, ref, atol=2e-2, rtol=2e-2), (out, ref)

    print("KERNEL_OK")
</pallas_src>

<mosaic_0001>
module attributes {stable_mosaic.version = 11 : i64} {
  func.func @chess_mlp_kernel(%arg0: i32, %arg1: memref<128x768xf32, #tpu.memory_space<vmem>>, %arg2: memref<768x256xbf16, #tpu.memory_space<vmem>>, %arg3: memref<1x256xf32, #tpu.memory_space<vmem>>, %arg4: memref<1x256xf32, #tpu.memory_space<vmem>>, %arg5: memref<1x1xf32, #tpu.memory_space<smem>>, %arg6: memref<128x1xf32, #tpu.memory_space<vmem>>) attributes {dimension_semantics = [#tpu.dimension_semantics<parallel>], iteration_bounds = array<i64: 1>, scalar_prefetch = 0 : i64, scratch_operands = 0 : i64, tpu.core_type = #tpu.core_type<tc>, window_params = [{transform_indices = @transform_0, window_bounds = array<i64: 128, 768>}, {pipeline_mode = #tpu.pipeline_mode<synchronous>, transform_indices = @transform_1, window_bounds = array<i64: 768, 256>}, {pipeline_mode = #tpu.pipeline_mode<synchronous>, transform_indices = @transform_2, window_bounds = array<i64: 1, 256>}, {pipeline_mode = #tpu.pipeline_mode<synchronous>, transform_indices = @transform_3, window_bounds = array<i64: 1, 256>}, {transform_indices = @transform_4, window_bounds = array<i64: 1, 1>}, {transform_indices = @transform_5, window_bounds = array<i64: 128, 1>}]} {
    %c0 = arith.constant 0 : index
    %c0_0 = arith.constant 0 : index
    %0 = vector.load %arg1[%c0, %c0_0] : memref<128x768xf32, #tpu.memory_space<vmem>>, vector<128x768xf32>
    %1 = arith.truncf %0 : vector<128x768xf32> to vector<128x768xbf16>
    %c0_1 = arith.constant 0 : index
    %c0_2 = arith.constant 0 : index
    %2 = vector.load %arg2[%c0_1, %c0_2] : memref<768x256xbf16, #tpu.memory_space<vmem>>, vector<768x256xbf16>
    %cst = arith.constant dense<0.000000e+00> : vector<128x256xf32>
    %3 = tpu.matmul %1, %2, %cst {dimension_numbers = #tpu.dot_dimension_numbers<[1], [0], [0], [1], [0, 0, 1, 1], [], []>} : vector<128x768xbf16>, vector<768x256xbf16>, vector<128x256xf32> -> vector<128x256xf32>
    %c0_3 = arith.constant 0 : index
    %c0_4 = arith.constant 0 : index
    %4 = vector.load %arg3[%c0_3, %c0_4] : memref<1x256xf32, #tpu.memory_space<vmem>>, vector<1x256xf32>
    %5 = vector.broadcast %4 : vector<1x256xf32> to vector<128x256xf32>
    %6 = arith.addf %3, %5 : vector<128x256xf32>
    %cst_5 = arith.constant 0.000000e+00 : f32
    %7 = vector.broadcast %cst_5 : f32 to vector<128x256xf32>
    %8 = arith.cmpf oge, %6, %7 : vector<128x256xf32>
    %cst_6 = arith.constant 0.000000e+00 : f32
    %9 = vector.broadcast %cst_6 : f32 to vector<128x256xf32>
    %10 = arith.subf %9, %6 : vector<128x256xf32>
    %11 = arith.select %8, %10, %6 : vector<128x256xi1>, vector<128x256xf32>
    %12 = math.exp %11 : vector<128x256xf32>
    %cst_7 = arith.constant 1.000000e+00 : f32
    %13 = vector.broadcast %cst_7 : f32 to vector<128x256xf32>
    %14 = arith.addf %13, %12 : vector<128x256xf32>
    %15 = tpu.reciprocal %14 {approx = true} : vector<128x256xf32> -> vector<128x256xf32>
    %16 = arith.mulf %12, %15 : vector<128x256xf32>
    %17 = arith.select %8, %15, %16 : vector<128x256xi1>, vector<128x256xf32>
    %c0_8 = arith.constant 0 : index
    %c0_9 = arith.constant 0 : index
    %18 = vector.load %arg4[%c0_8, %c0_9] : memref<1x256xf32, #tpu.memory_space<vmem>>, vector<1x256xf32>
    %19 = vector.broadcast %18 : vector<1x256xf32> to vector<128x256xf32>
    %20 = arith.mulf %17, %19 : vector<128x256xf32>
    %cst_10 = arith.constant dense<0.000000e+00> : vector<128xf32>
    %21 = vector.multi_reduction <add>, %20, %cst_10 [1] : vector<128x256xf32> to vector<128xf32>
    %22 = vector.shape_cast %21 : vector<128xf32> to vector<128x1xf32>
    %c0_11 = arith.constant 0 : index
    %c0_12 = arith.constant 0 : index
    %23 = memref.load %arg5[%c0_11, %c0_12] : memref<1x1xf32, #tpu.memory_space<smem>>
    %24 = vector.broadcast %23 : f32 to vector<128x1xf32>
    %25 = arith.addf %22, %24 : vector<128x1xf32>
    %c0_13 = arith.constant 0 : index
    %c0_14 = arith.constant 0 : index
    %26 = vector.load %arg6[%c0_13, %c0_14] : memref<128x1xf32, #tpu.memory_space<vmem>>, vector<128x1xf32>
    tpu.vector_store %arg6[%c0_13, %c0_14], %25 {strides = array<i32>} : memref<128x1xf32, #tpu.memory_space<vmem>>, vector<128x1xf32>,
    return
  }
  func.func @transform_0(%arg0: i32) -> (i32, i32) {
    %c0_i32 = arith.constant 0 : i32
    %c0_i32_0 = arith.constant 0 : i32
    return %arg0, %c0_i32 : i32, i32
  }
  func.func @transform_1(%arg0: i32) -> (i32, i32) {
    %c0_i32 = arith.constant 0 : i32
    %c0_i32_0 = arith.constant 0 : i32
    %c0_i32_1 = arith.constant 0 : i32
    return %c0_i32, %c0_i32_0 : i32, i32
  }
  func.func @transform_2(%arg0: i32) -> (i32, i32) {
    %c0_i32 = arith.constant 0 : i32
    %c0_i32_0 = arith.constant 0 : i32
    %c0_i32_1 = arith.constant 0 : i32
    return %c0_i32, %c0_i32_0 : i32, i32
  }
  func.func @transform_3(%arg0: i32) -> (i32, i32) {
    %c0_i32 = arith.constant 0 : i32
    %c0_i32_0 = arith.constant 0 : i32
    %c0_i32_1 = arith.constant 0 : i32
    return %c0_i32, %c0_i32_0 : i32, i32
  }
  func.func @transform_4(%arg0: i32) -> (i32, i32) {
    %c0_i32 = arith.constant 0 : i32
    %c0_i32_0 = arith.constant 0 : i32
    %c0_i32_1 = arith.constant 0 : i32
    return %c0_i32, %c0_i32_0 : i32, i32
  }
  func.func @transform_5(%arg0: i32) -> (i32, i32) {
    %c0_i32 = arith.constant 0 : i32
    %c0_i32_0 = arith.constant 0 : i32
    return %arg0, %c0_i32 : i32, i32
  }
}

</mosaic_0001>

<llo_original>
// kernel: tpu_custom_call.1
$region0: #{tpu_custom_call.1}
  #allocation0 [shape = 'u32[]', space=smem, size = 0x4, offset = 0x4, fixed_abs, tag = 'smem constant byte address 0x4 - core index']
  #allocation1 [shape = 'u32[144,128]{1,0:T(1,128)}', space=vmem, size = 0x12000, scoped, tag = 'internal scratch']
  #allocation2 [shape = 'f32[1,1]{1,0:T(1,128)S(6)}', space=smem, size = 0x200, scoped, tag = 'scoped memory for tpu_custom_call.1']
  %s0 = inlined_call_operand.hbm [shape: f32[2,768], index: 0, kind: input, shape index: {}]
  %s1 = inlined_call_operand.hbm [shape: bf16[768,256], index: 1, kind: input, shape index: {}]
  %s2 = inlined_call_operand.vmem [shape: f32[1,256], index: 2, kind: input, shape index: {}]
  %s3 = inlined_call_operand.vmem [shape: f32[1,256], index: 3, kind: input, shape index: {}]
  %s4 = inlined_call_operand.<no memory space> [shape: f32[1,1], index: 4, kind: input, shape index: {}]
  %s5 = inlined_call_operand.vmem [shape: f32[2,1], index: 5, kind: output, shape index: {}]
  %s6 = sld [smem:[#allocation0]]
  $region68: #{tpu_custom_call.1} parent=0
    _
  %s8 = ssub.s32 1, %s6
  %s9 = scalar_select 0, %s8, %s6
  %10 = sst [smem:[#allocation2]] %s4
  $region1: #{tpu_custom_call.1} parent=0
    #allocation3 [shape = 'u8[393216]{0}', space=vmem, size = 0x60000, scoped, tag = 'input window, operand 0, single buffered']
    #allocation4 [shape = 's32[1]{0}', space=sflag, size = 0x4, scoped, tag = 'scoped memory for tpu_custom_call.1']
    #allocation5 [shape = 'u8[393216]{0}', space=vmem, size = 0x60000, scoped, tag = 'input window, operand 1, single buffered']
    #allocation6 [shape = 's32[1]{0}', space=sflag, size = 0x4, scoped, tag = 'scoped memory for tpu_custom_call.1']
    #allocation7 [shape = 'u8[65536]{0}', space=vmem, size = 0x10000, scoped, tag = 'output window, operand 0, single buffered']
    %11 = vsyncpa [#allocation4], 0
    %12 = vsyncpa [#allocation6], 0
    // Predicated region
    $region2: #{tpu_custom_call.1} parent=1 // pred_check
      _
    $region3: #{tpu_custom_call.1} parent=1 // pred_check_branch
      %14 = sbr.rel (0) target = $region5
    $region4: #{tpu_custom_call.1} parent=1 // pred_region
      %s16 = ssub.s32 12288, 192
      %17 = vsyncadd [#allocation4], %s16
      %s18 = sshll.u32 [#allocation3], 4
      %s19 = int_to_ptr.vmem [resolvable:$true] %s18
      %24 = dma.hbm_to_vmem [thread:$0]  %s0, 192, %s19, [#allocation4], 192, 192, 12
    $region5: #{tpu_custom_call.1} parent=1 // pred_fallthru
      _
    // Predicated region
    $region6: #{tpu_custom_call.1} parent=1 // pred_check
      _
    $region7: #{tpu_custom_call.1} parent=1 // pred_check_branch
      %26 = sbr.rel (0) target = $region9
    $region8: #{tpu_custom_call.1} parent=1 // pred_region
      %s28 = ssub.s32 12288, 12288
      %29 = vsyncadd [#allocation6], %s28
      %s30 = sshll.u32 [#allocation5], 4
      %s31 = int_to_ptr.vmem [resolvable:$true] %s30
      %36 = dma.hbm_to_vmem [thread:$0]  %s1, 12288, %s31, [#allocation6], 128, 128, 8
    $region9: #{tpu_custom_call.1} parent=1 // pred_fallthru
      _
    // Predicated region
    $region10: #{tpu_custom_call.1} parent=1 // pred_check
      _
    $region11: #{tpu_custom_call.1} parent=1 // pred_check_branch
      %38 = sbr.rel (0) target = $region13
    $region12: #{tpu_custom_call.1} parent=1 // pred_region
      _
    $region13: #{tpu_custom_call.1} parent=1 // pred_fallthru
      _
    // Predicated region
    $region14: #{tpu_custom_call.1} parent=1 // pred_check
      _
    $region15: #{tpu_custom_call.1} parent=1 // pred_check_branch
      %40 = sbr.rel (0) target = $region17
    $region16: #{tpu_custom_call.1} parent=1 // pred_region
      _
    $region17: #{tpu_custom_call.1} parent=1 // pred_fallthru
      _
    // Predicated region
    $region18: #{tpu_custom_call.1} parent=1 // pred_check
      _
    $region19: #{tpu_custom_call.1} parent=1 // pred_check_branch
      %42 = sbr.rel (0) target = $region21
    $region20: #{tpu_custom_call.1} parent=1 // pred_region
      _
    $region21: #{tpu_custom_call.1} parent=1 // pred_fallthru
      _
    // Predicated region
    $region22: #{tpu_custom_call.1} parent=1 // pred_check
      _
    $region23: #{tpu_custom_call.1} parent=1 // pred_check_branch
      %44 = sbr.rel (0) target = $region25
    $region24: #{tpu_custom_call.1} parent=1 // pred_region
      %45 = dma.done [#allocation4], 12288
    $region25: #{tpu_custom_call.1} parent=1 // pred_fallthru
      _
    // Predicated region
    $region26: #{tpu_custom_call.1} parent=1 // pred_check
      _
    $region27: #{tpu_custom_call.1} parent=1 // pred_check_branch
      %47 = sbr.rel (0) target = $region29
    $region28: #{tpu_custom_call.1} parent=1 // pred_region
      %48 = dma.done [#allocation6], 12288
    $region29: #{tpu_custom_call.1} parent=1 // pred_fallthru
      _
    %v49 = vld [vmem:[#allocation3] sm:$0xff]
    %v50 = vld [vmem:[#allocation3 + $0x8] sm:$0xf]
    %v51 = vld [vmem:[#allocation3 + $0xc] sm:$0xff]
    %v52 = vld [vmem:[#allocation3 + $0x14] sm:$0xf]
    %v53 = vld [vmem:[#allocation3 + $0x18] sm:$0xff]
    %v54 = vld [vmem:[#allocation3 + $0x20] sm:$0xf]
    %v55 = vld [vmem:[#allocation3 + $0x24] sm:$0xff]
    %v56 = vld [vmem:[#allocation3 + $0x2c] sm:$0xf]
    %v57 = vld [vmem:[#allocation3 + $0x30] sm:$0xff]
    %v58 = vld [vmem:[#allocation3 + $0x38] sm:$0xf]
    %v59 = vld [vmem:[#allocation3 + $0x3c] sm:$0xff]
    %v60 = vld [vmem:[#allocation3 + $0x44] sm:$0xf]
    %v61 = vld [vmem:[#allocation3 + $0x48] sm:$0xff]
    %v62 = vld [vmem:[#allocation3 + $0x50] sm:$0xf]
    %v63 = vld [vmem:[#allocation3 + $0x54] sm:$0xff]
    %v64 = vld [vmem:[#allocation3 + $0x5c] sm:$0xf]
    %v65 = vld [vmem:[#allocation3 + $0x60] sm:$0xff]
    %v66 = vld [vmem:[#allocation3 + $0x68] sm:$0xf]
    %v67 = vld [vmem:[#allocation3 + $0x6c] sm:$0xff]
    %v68 = vld [vmem:[#allocation3 + $0x74] sm:$0xf]
    %v69 = vld [vmem:[#allocation3 + $0x78] sm:$0xff]
    %v70 = vld [vmem:[#allocation3 + $0x80] sm:$0xf]
    %v71 = vld [vmem:[#allocation3 + $0x84] sm:$0xff]
    %v72 = vld [vmem:[#allocation3 + $0x8c] sm:$0xf]
    %v73 = vld [vmem:[#allocation3 + $0x90] sm:$0xff]
    %v74 = vld [vmem:[#allocation3 + $0x98] sm:$0xf]
    %v75 = vld [vmem:[#allocation3 + $0x9c] sm:$0xff]
    %v76 = vld [vmem:[#allocation3 + $0xa4] sm:$0xf]
    %v77 = vld [vmem:[#allocation3 + $0xa8] sm:$0xff]
    %v78 = vld [vmem:[#allocation3 + $0xb0] sm:$0xf]
    %v79 = vld [vmem:[#allocation3 + $0xb4] sm:$0xff]
    %v80 = vld [vmem:[#allocation3 + $0xbc] sm:$0xf]
    %v81 = vld [vmem:[#allocation3 + $0xc0] sm:$0xff]
    %v82 = vld [vmem:[#allocation3 + $0xc8] sm:$0xf]
    %v83 = vld [vmem:[#allocation3 + $0xcc] sm:$0xff]
    %v84 = vld [vmem:[#allocation3 + $0xd4] sm:$0xf]
    %v85 = vld [vmem:[#allocation3 + $0xd8] sm:$0xff]
    %v86 = vld [vmem:[#allocation3 + $0xe0] sm:$0xf]
    %v87 = vld [vmem:[#allocation3 + $0xe4] sm:$0xff]
    %v88 = vld [vmem:[#allocation3 + $0xec] sm:$0xf]
    %v89 = vld [vmem:[#allocation3 + $0xf0] sm:$0xff]
    %v90 = vld [vmem:[#allocation3 + $0xf8] sm:$0xf]
    %v91 = vld [vmem:[#allocation3 + $0xfc] sm:$0xff]
    %v92 = vld [vmem:[#allocation3 + $0x104] sm:$0xf]
    %v93 = vld [vmem:[#allocation3 + $0x108] sm:$0xff]
    %v94 = vld [vmem:[#allocation3 + $0x110] sm:$0xf]
    %v95 = vld [vmem:[#allocation3 + $0x114] sm:$0xff]
    %v96 = vld [vmem:[#allocation3 + $0x11c] sm:$0xf]
    %v97 = vld [vmem:[#allocation3 + $0x120] sm:$0xff]
    %v98 = vld [vmem:[#allocation3 + $0x128] sm:$0xf]
    %v99 = vld [vmem:[#allocation3 + $0x12c] sm:$0xff]
    %v100 = vld [vmem:[#allocation3 + $0x134] sm:$0xf]
    %v101 = vld [vmem:[#allocation3 + $0x138] sm:$0xff]
    %v102 = vld [vmem:[#allocation3 + $0x140] sm:$0xf]
    %v103 = vld [vmem:[#allocation3 + $0x144] sm:$0xff]
    %v104 = vld [vmem:[#allocation3 + $0x14c] sm:$0xf]
    %v105 = vld [vmem:[#allocation3 + $0x150] sm:$0xff]
    %v106 = vld [vmem:[#allocation3 + $0x158] sm:$0xf]
    %v107 = vld [vmem:[#allocation3 + $0x15c] sm:$0xff]
    %v108 = vld [vmem:[#allocation3 + $0x164] sm:$0xf]
    %v109 = vld [vmem:[#allocation3 + $0x168] sm:$0xff]
    %v110 = vld [vmem:[#allocation3 + $0x170] sm:$0xf]
    %v111 = vld [vmem:[#allocation3 + $0x174] sm:$0xff]
    %v112 = vld [vmem:[#allocation3 + $0x17c] sm:$0xf]
    %v113 = vld [vmem:[#allocation3 + $0x180] sm:$0xff]
    %v114 = vld [vmem:[#allocation3 + $0x188] sm:$0xf]
    %v115 = vld [vmem:[#allocation3 + $0x18c] sm:$0xff]
    %v116 = vld [vmem:[#allocation3 + $0x194] sm:$0xf]
    %v117 = vld [vmem:[#allocation3 + $0x198] sm:$0xff]
    %v118 = vld [vmem:[#allocation3 + $0x1a0] sm:$0xf]
    %v119 = vld [vmem:[#allocation3 + $0x1a4] sm:$0xff]
    %v120 = vld [vmem:[#allocation3 + $0x1ac] sm:$0xf]
    %v121 = vld [vmem:[#allocation3 + $0x1b0] sm:$0xff]
    %v122 = vld [vmem:[#allocation3 + $0x1b8] sm:$0xf]
    %v123 = vld [vmem:[#allocation3 + $0x1bc] sm:$0xff]
    %v124 = vld [vmem:[#allocation3 + $0x1c4] sm:$0xf]
    %v125 = vld [vmem:[#allocation3 + $0x1c8] sm:$0xff]
    %v126 = vld [vmem:[#allocation3 + $0x1d0] sm:$0xf]
    %v127 = vld [vmem:[#allocation3 + $0x1d4] sm:$0xff]
    %v128 = vld [vmem:[#allocation3 + $0x1dc] sm:$0xf]
    %v129 = vld [vmem:[#allocation3 + $0x1e0] sm:$0xff]
    %v130 = vld [vmem:[#allocation3 + $0x1e8] sm:$0xf]
    %v131 = vld [vmem:[#allocation3 + $0x1ec] sm:$0xff]
    %v132 = vld [vmem:[#allocation3 + $0x1f4] sm:$0xf]
    %v133 = vld [vmem:[#allocation3 + $0x1f8] sm:$0xff]
    %v134 = vld [vmem:[#allocation3 + $0x200] sm:$0xf]
    %v135 = vld [vmem:[#allocation3 + $0x204] sm:$0xff]
    %v136 = vld [vmem:[#allocation3 + $0x20c] sm:$0xf]
    %v137 = vld [vmem:[#allocation3 + $0x210] sm:$0xff]
    %v138 = vld [vmem:[#allocation3 + $0x218] sm:$0xf]
    %v139 = vld [vmem:[#allocation3 + $0x21c] sm:$0xff]
    %v140 = vld [vmem:[#allocation3 + $0x224] sm:$0xf]
    %v141 = vld [vmem:[#allocation3 + $0x228] sm:$0xff]
    %v142 = vld [vmem:[#allocation3 + $0x230] sm:$0xf]
    %v143 = vld [vmem:[#allocation3 + $0x234] sm:$0xff]
    %v144 = vld [vmem:[#allocation3 + $0x23c] sm:$0xf]
    %v145 = vld [vmem:[#allocation3 + $0x240] sm:$0xff]
    %v146 = vld [vmem:[#allocation3 + $0x248] sm:$0xf]
    %v147 = vld [vmem:[#allocation3 + $0x24c] sm:$0xff]
    %v148 = vld [vmem:[#allocation3 + $0x254] sm:$0xf]
    %v149 = vld [vmem:[#allocation3 + $0x258] sm:$0xff]
    %v150 = vld [vmem:[#allocation3 + $0x260] sm:$0xf]
    %v151 = vld [vmem:[#allocation3 + $0x264] sm:$0xff]
    %v152 = vld [vmem:[#allocation3 + $0x26c] sm:$0xf]
    %v153 = vld [vmem:[#allocation3 + $0x270] sm:$0xff]
    %v154 = vld [vmem:[#allocation3 + $0x278] sm:$0xf]
    %v155 = vld [vmem:[#allocation3 + $0x27c] sm:$0xff]
    %v156 = vld [vmem:[#allocation3 + $0x284] sm:$0xf]
    %v157 = vld [vmem:[#allocation3 + $0x288] sm:$0xff]
    %v158 = vld [vmem:[#allocation3 + $0x290] sm:$0xf]
    %v159 = vld [vmem:[#allocation3 + $0x294] sm:$0xff]
    %v160 = vld [vmem:[#allocation3 + $0x29c] sm:$0xf]
    %v161 = vld [vmem:[#allocation3 + $0x2a0] sm:$0xff]
    %v162 = vld [vmem:[#allocation3 + $0x2a8] sm:$0xf]
    %v163 = vld [vmem:[#allocation3 + $0x2ac] sm:$0xff]
    %v164 = vld [vmem:[#allocation3 + $0x2b4] sm:$0xf]
    %v165 = vld [vmem:[#allocation3 + $0x2b8] sm:$0xff]
    %v166 = vld [vmem:[#allocation3 + $0x2c0] sm:$0xf]
    %v167 = vld [vmem:[#allocation3 + $0x2c4] sm:$0xff]
    %v168 = vld [vmem:[#allocation3 + $0x2cc] sm:$0xf]
    %v169 = vld [vmem:[#allocation3 + $0x2d0] sm:$0xff]
    %v170 = vld [vmem:[#allocation3 + $0x2d8] sm:$0xf]
    %v171 = vld [vmem:[#allocation3 + $0x2dc] sm:$0xff]
    %v172 = vld [vmem:[#allocation3 + $0x2e4] sm:$0xf]
    %v173 = vld [vmem:[#allocation3 + $0x2e8] sm:$0xff]
    %v174 = vld [vmem:[#allocation3 + $0x2f0] sm:$0xf]
    %v175 = vld [vmem:[#allocation3 + $0x2f4] sm:$0xff]
    %v176 = vld [vmem:[#allocation3 + $0x2fc] sm:$0xf]
    %v305 = vcombine.low %v49, %v51
    %v306 = vcombine.high %v49, %v51
    %v307 = vcombine.low %v53, %v55
    %v308 = vcombine.high %v53, %v55
    %v310 = vunpack.c.l.s4 1983009808
    %v311 = vunpack.c.0.s8 %v310
    %v312 = vlaneseq
    %v313 = vshrl.u32 %v312, 7
    %v314 = vsub.s32 %v311, %v313
    %v315 = vrot.slane %v305, %v314
    %v317 = vunpack.c.l.s4 1983009808
    %v318 = vunpack.c.0.s8 %v317
    %v319 = vlaneseq
    %v320 = vshrl.u32 %v319, 7
    %v321 = vsub.s32 %v318, %v320
    %v322 = vrot.slane %v306, %v321
    %v324 = vunpack.c.l.s4 1983009808
    %v325 = vunpack.c.0.s8 %v324
    %v326 = vlaneseq
    %v327 = vshrl.u32 %v326, 7
    %v328 = vsub.s32 %v325, %v327
    %v329 = vrot.slane %v307, %v328
    %v331 = vunpack.c.l.s4 1983009808
    %v332 = vunpack.c.0.s8 %v331
    %v333 = vlaneseq
    %v334 = vshrl.u32 %v333, 7
    %v335 = vsub.s32 %v332, %v334
    %v336 = vrot.slane %v308, %v335
    %v337 = vcombine.low %v315, %v329
    %v338 = vcombine.high %v315, %v329
    %v339 = vcombine.low %v322, %v336
    %v340 = vcombine.high %v322, %v336
    %v341 = vcombine.low %v50, %v52
    %v342 = vcombine.low %v54, %v56
    %v344 = vunpack.c.l.s4 1983009808
    %v345 = vunpack.c.0.s8 %v344
    %v346 = vlaneseq
    %v347 = vshrl.u32 %v346, 7
    %v348 = vsub.s32 %v345, %v347
    %v349 = vrot.slane %v341, %v348
    %v351 = vunpack.c.l.s4 1983009808
    %v352 = vunpack.c.0.s8 %v351
    %v353 = vlaneseq
    %v354 = vshrl.u32 %v353, 7
    %v355 = vsub.s32 %v352, %v354
    %v356 = vrot.slane %v342, %v355
    %v357 = vcombine.low %v349, %v356
    %v358 = vcombine.high %v349, %v356
    %v359 = vcombine.low %v57, %v59
    %v360 = vcombine.high %v57, %v59
    %v361 = vcombine.low %v61, %v63
    %v362 = vcombine.high %v61, %v63
    %v364 = vunpack.c.l.s4 1983009808
    %v365 = vunpack.c.0.s8 %v364
    %v366 = vlaneseq
    %v367 = vshrl.u32 %v366, 7
    %v368 = vsub.s32 %v365, %v367
    %v369 = vrot.slane %v359, %v368
    %v371 = vunpack.c.l.s4 1983009808
    %v372 = vunpack.c.0.s8 %v371
    %v373 = vlaneseq
    %v374 = vshrl.u32 %v373, 7
    %v375 = vsub.s32 %v372, %v374
    %v376 = vrot.slane %v360, %v375
    %v378 = vunpack.c.l.s4 1983009808
    %v379 = vunpack.c.0.s8 %v378
    %v380 = vlaneseq
    %v381 = vshrl.u32 %v380, 7
    %v382 = vsub.s32 %v379, %v381
    %v383 = vrot.slane %v361, %v382
    %v385 = vunpack.c.l.s4 1983009808
    %v386 = vunpack.c.0.s8 %v385
    %v387 = vlaneseq
    %v388 = vshrl.u32 %v387, 7
    %v389 = vsub.s32 %v386, %v388
    %v390 = vrot.slane %v362, %v389
    %v391 = vcombine.low %v369, %v383
    %v392 = vcombine.high %v369, %v383
    %v393 = vcombine.low %v376, %v390
    %v394 = vcombine.high %v376, %v390
    %v395 = vcombine.low %v58, %v60
    %v396 = vcombine.low %v62, %v64
    %v398 = vunpack.c.l.s4 1983009808
    %v399 = vunpack.c.0.s8 %v398
    %v400 = vlaneseq
    %v401 = vshrl.u32 %v400, 7
    %v402 = vsub.s32 %v399, %v401
    %v403 = vrot.slane %v395, %v402
    %v405 = vunpack.c.l.s4 1983009808
    %v406 = vunpack.c.0.s8 %v405
    %v407 = vlaneseq
    %v408 = vshrl.u32 %v407, 7
    %v409 = vsub.s32 %v406, %v408
    %v410 = vrot.slane %v396, %v409
    %v411 = vcombine.low %v403, %v410
    %v412 = vcombine.high %v403, %v410
    %v413 = vcombine.low %v65, %v67
    %v414 = vcombine.high %v65, %v67
    %v415 = vcombine.low %v69, %v71
    %v416 = vcombine.high %v69, %v71
    %v418 = vunpack.c.l.s4 1983009808
    %v419 = vunpack.c.0.s8 %v418
    %v420 = vlaneseq
    %v421 = vshrl.u32 %v420, 7
    %v422 = vsub.s32 %v419, %v421
    %v423 = vrot.slane %v413, %v422
    %v425 = vunpack.c.l.s4 1983009808
    %v426 = vunpack.c.0.s8 %v425
    %v427 = vlaneseq
    %v428 = vshrl.u32 %v427, 7
    %v429 = vsub.s32 %v426, %v428
    %v430 = vrot.slane %v414, %v429
    %v432 = vunpack.c.l.s4 1983009808
    %v433 = vunpack.c.0.s8 %v432
    %v434 = vlaneseq
    %v435 = vshrl.u32 %v434, 7
    %v436 = vsub.s32 %v433, %v435
    %v437 = vrot.slane %v415, %v436
    %v439 = vunpack.c.l.s4 1983009808
    %v440 = vunpack.c.0.s8 %v439
    %v441 = vlaneseq
    %v442 = vshrl.u32 %v441, 7
    %v443 = vsub.s32 %v440, %v442
    %v444 = vrot.slane %v416, %v443
    %v445 = vcombine.low %v423, %v437
    %v446 = vcombine.high %v423, %v437
    %v447 = vcombine.low %v430, %v444
    %v448 = vcombine.high %v430, %v444
    %v449 = vcombine.low %v66, %v68
    %v450 = vcombine.low %v70, %v72
    %v452 = vunpack.c.l.s4 1983009808
    %v453 = vunpack.c.0.s8 %v452
    %v454 = vlaneseq
    %v455 = vshrl.u32 %v454, 7
    %v456 = vsub.s32 %v453, %v455
    %v457 = vrot.slane %v449, %v456
    %v459 = vunpack.c.l.s4 1983009808
    %v460 = vunpack.c.0.s8 %v459
    %v461 = vlaneseq
    %v462 = vshrl.u32 %v461, 7
    %v463 = vsub.s32 %v460, %v462
    %v464 = vrot.slane %v450, %v463
    %v465 = vcombine.low %v457, %v464
    %v466 = vcombine.high %v457, %v464
    %v467 = vcombine.low %v73, %v75
    %v468 = vcombine.high %v73, %v75
    %v469 = vcombine.low %v77, %v79
    %v470 = vcombine.high %v77, %v79
    %v472 = vunpack.c.l.s4 1983009808
    %v473 = vunpack.c.0.s8 %v472
    %v474 = vlaneseq
    %v475 = vshrl.u32 %v474, 7
    %v476 = vsub.s32 %v473, %v475
    %v477 = vrot.slane %v467, %v476
    %v479 = vunpack.c.l.s4 1983009808
    %v480 = vunpack.c.0.s8 %v479
    %v481 = vlaneseq
    %v482 = vshrl.u32 %v481, 7
    %v483 = vsub.s32 %v480, %v482
    %v484 = vrot.slane %v468, %v483
    %v486 = vunpack.c.l.s4 1983009808
    %v487 = vunpack.c.0.s8 %v486
    %v488 = vlaneseq
    %v489 = vshrl.u32 %v488, 7
    %v490 = vsub.s32 %v487, %v489
    %v491 = vrot.slane %v469, %v490
    %v493 = vunpack.c.l.s4 1983009808
    %v494 = vunpack.c.0.s8 %v493
    %v495 = vlaneseq
    %v496 = vshrl.u32 %v495, 7
    %v497 = vsub.s32 %v494, %v496
    %v498 = vrot.slane %v470, %v497
    %v499 = vcombine.low %v477, %v491
    %v500 = vcombine.high %v477, %v491
    %v501 = vcombine.low %v484, %v498
    %v502 = vcombine.high %v484, %v498
    %v503 = vcombine.low %v74, %v76
    %v504 = vcombine.low %v78, %v80
    %v506 = vunpack.c.l.s4 1983009808
    %v507 = vunpack.c.0.s8 %v506
    %v508 = vlaneseq
    %v509 = vshrl.u32 %v508, 7
    %v510 = vsub.s32 %v507, %v509
    %v511 = vrot.slane %v503, %v510
    %v513 = vunpack.c.l.s4 1983009808
    %v514 = vunpack.c.0.s8 %v513
    %v515 = vlaneseq
    %v516 = vshrl.u32 %v515, 7
    %v517 = vsub.s32 %v514, %v516
    %v518 = vrot.slane %v504, %v517
    %v519 = vcombine.low %v511, %v518
    %v520 = vcombine.high %v511, %v518
    %v521 = vcombine.low %v81, %v83
    %v522 = vcombine.high %v81, %v83
    %v523 = vcombine.low %v85, %v87
    %v524 = vcombine.high %v85, %v87
    %v526 = vunpack.c.l.s4 1983009808
    %v527 = vunpack.c.0.s8 %v526
    %v528 = vlaneseq
    %v529 = vshrl.u32 %v528, 7
    %v530 = vsub.s32 %v527, %v529
    %v531 = vrot.slane %v521, %v530
    %v533 = vunpack.c.l.s4 1983009808
    %v534 = vunpack.c.0.s8 %v533
    %v535 = vlaneseq
    %v536 = vshrl.u32 %v535, 7
    %v537 = vsub.s32 %v534, %v536
    %v538 = vrot.slane %v522, %v537
    %v540 = vunpack.c.l.s4 1983009808
    %v541 = vunpack.c.0.s8 %v540
    %v542 = vlaneseq
    %v543 = vshrl.u32 %v542, 7
    %v544 = vsub.s32 %v541, %v543
    %v545 = vrot.slane %v523, %v544
    %v547 = vunpack.c.l.s4 1983009808
    %v548 = vunpack.c.0.s8 %v547
    %v549 = vlaneseq
    %v550 = vshrl.u32 %v549, 7
    %v551 = vsub.s32 %v548, %v550
    %v552 = vrot.slane %v524, %v551
    %v553 = vcombine.low %v531, %v545
    %v554 = vcombine.high %v531, %v545
    %v555 = vcombine.low %v538, %v552
    %v556 = vcombine.high %v538, %v552
    %v557 = vcombine.low %v82, %v84
    %v558 = vcombine.low %v86, %v88
    %v560 = vunpack.c.l.s4 1983009808
    %v561 = vunpack.c.0.s8 %v560
    %v562 = vlaneseq
    %v563 = vshrl.u32 %v562, 7
    %v564 = vsub.s32 %v561, %v563
    %v565 = vrot.slane %v557, %v564
    %v567 = vunpack.c.l.s4 1983009808
    %v568 = vunpack.c.0.s8 %v567
    %v569 = vlaneseq
    %v570 = vshrl.u32 %v569, 7
    %v571 = vsub.s32 %v568, %v570
    %v572 = vrot.slane %v558, %v571
    %v573 = vcombine.low %v565, %v572
    %v574 = vcombine.high %v565, %v572
    %v575 = vcombine.low %v89, %v91
    %v576 = vcombine.high %v89, %v91
    %v577 = vcombine.low %v93, %v95
    %v578 = vcombine.high %v93, %v95
    %v580 = vunpack.c.l.s4 1983009808
    %v581 = vunpack.c.0.s8 %v580
    %v582 = vlaneseq
    %v583 = vshrl.u32 %v582, 7
    %v584 = vsub.s32 %v581, %v583
    %v585 = vrot.slane %v575, %v584
    %v587 = vunpack.c.l.s4 1983009808
    %v588 = vunpack.c.0.s8 %v587
    %v589 = vlaneseq
    %v590 = vshrl.u32 %v589, 7
    %v591 = vsub.s32 %v588, %v590
    %v592 = vrot.slane %v576, %v591
    %v594 = vunpack.c.l.s4 1983009808
    %v595 = vunpack.c.0.s8 %v594
    %v596 = vlaneseq
    %v597 = vshrl.u32 %v596, 7
    %v598 = vsub.s32 %v595, %v597
    %v599 = vrot.slane %v577, %v598
    %v601 = vunpack.c.l.s4 1983009808
    %v602 = vunpack.c.0.s8 %v601
    %v603 = vlaneseq
    %v604 = vshrl.u32 %v603, 7
    %v605 = vsub.s32 %v602, %v604
    %v606 = vrot.slane %v578, %v605
    %v607 = vcombine.low %v585, %v599
    %v608 = vcombine.high %v585, %v599
    %v609 = vcombine.low %v592, %v606
    %v610 = vcombine.high %v592, %v606
    %v611 = vcombine.low %v90, %v92
    %v612 = vcombine.low %v94, %v96
    %v614 = vunpack.c.l.s4 1983009808
    %v615 = vunpack.c.0.s8 %v614
    %v616 = vlaneseq
    %v617 = vshrl.u32 %v616, 7
    %v618 = vsub.s32 %v615, %v617
    %v619 = vrot.slane %v611, %v618
    %v621 = vunpack.c.l.s4 1983009808
    %v622 = vunpack.c.0.s8 %v621
    %v623 = vlaneseq
    %v624 = vshrl.u32 %v623, 7
    %v625 = vsub.s32 %v622, %v624
    %v626 = vrot.slane %v612, %v625
    %v627 = vcombine.low %v619, %v626
    %v628 = vcombine.high %v619, %v626
    %v629 = vcombine.low %v97, %v99
    %v630 = vcombine.high %v97, %v99
    %v631 = vcombine.low %v101, %v103
    %v632 = vcombine.high %v101, %v103
    %v634 = vunpack.c.l.s4 1983009808
    %v635 = vunpack.c.0.s8 %v634
    %v636 = vlaneseq
    %v637 = vshrl.u32 %v636, 7
    %v638 = vsub.s32 %v635, %v637
    %v639 = vrot.slane %v629, %v638
    %v641 = vunpack.c.l.s4 1983009808
    %v642 = vunpack.c.0.s8 %v641
    %v643 = vlaneseq
    %v644 = vshrl.u32 %v643, 7
    %v645 = vsub.s32 %v642, %v644
    %v646 = vrot.slane %v630, %v645
    %v648 = vunpack.c.l.s4 1983009808
    %v649 = vunpack.c.0.s8 %v648
    %v650 = vlaneseq
    %v651 = vshrl.u32 %v650, 7
    %v652 = vsub.s32 %v649, %v651
    %v653 = vrot.slane %v631, %v652
    %v655 = vunpack.c.l.s4 1983009808
    %v656 = vunpack.c.0.s8 %v655
    %v657 = vlaneseq
    %v658 = vshrl.u32 %v657, 7
    %v659 = vsub.s32 %v656, %v658
    %v660 = vrot.slane %v632, %v659
    %v661 = vcombine.low %v639, %v653
    %v662 = vcombine.high %v639, %v653
    %v663 = vcombine.low %v646, %v660
    %v664 = vcombine.high %v646, %v660
    %v665 = vcombine.low %v98, %v100
    %v666 = vcombine.low %v102, %v104
    %v668 = vunpack.c.l.s4 1983009808
    %v669 = vunpack.c.0.s8 %v668
    %v670 = vlaneseq
    %v671 = vshrl.u32 %v670, 7
    %v672 = vsub.s32 %v669, %v671
    %v673 = vrot.slane %v665, %v672
    %v675 = vunpack.c.l.s4 1983009808
    %v676 = vunpack.c.0.s8 %v675
    %v677 = vlaneseq
    %v678 = vshrl.u32 %v677, 7
    %v679 = vsub.s32 %v676, %v678
    %v680 = vrot.slane %v666, %v679
    %v681 = vcombine.low %v673, %v680
    %v682 = vcombine.high %v673, %v680
    %v683 = vcombine.low %v105, %v107
    %v684 = vcombine.high %v105, %v107
    %v685 = vcombine.low %v109, %v111
    %v686 = vcombine.high %v109, %v111
    %v688 = vunpack.c.l.s4 1983009808
    %v689 = vunpack.c.0.s8 %v688
    %v690 = vlaneseq
    %v691 = vshrl.u32 %v690, 7
    %v692 = vsub.s32 %v689, %v691
    %v693 = vrot.slane %v683, %v692
    %v695 = vunpack.c.l.s4 1983009808
    %v696 = vunpack.c.0.s8 %v695
    %v697 = vlaneseq
    %v698 = vshrl.u32 %v697, 7
    %v699 = vsub.s32 %v696, %v698
    %v700 = vrot.slane %v684, %v699
    %v702 = vunpack.c.l.s4 1983009808
    %v703 = vunpack.c.0.s8 %v702
    %v704 = vlaneseq
    %v705 = vshrl.u32 %v704, 7
    %v706 = vsub.s32 %v703, %v705
    %v707 = vrot.slane %v685, %v706
    %v709 = vunpack.c.l.s4 1983009808
    %v710 = vunpack.c.0.s8 %v709
    %v711 = vlaneseq
    %v712 = vshrl.u32 %v711, 7
    %v713 = vsub.s32 %v710, %v712
    %v714 = vrot.slane %v686, %v713
    %v715 = vcombine.low %v693, %v707
    %v716 = vcombine.high %v693, %v707
    %v717 = vcombine.low %v700, %v714
    %v718 = vcombine.high %v700, %v714
    %v719 = vcombine.low %v106, %v108
    %v720 = vcombine.low %v110, %v112
    %v722 = vunpack.c.l.s4 1983009808
    %v723 = vunpack.c.0.s8 %v722
    %v724 = vlaneseq
    %v725 = vshrl.u32 %v724, 7
    %v726 = vsub.s32 %v723, %v725
    %v727 = vrot.slane %v719, %v726
    %v729 = vunpack.c.l.s4 1983009808
    %v730 = vunpack.c.0.s8 %v729
    %v731 = vlaneseq
    %v732 = vshrl.u32 %v731, 7
    %v733 = vsub.s32 %v730, %v732
    %v734 = vrot.slane %v720, %v733
    %v735 = vcombine.low %v727, %v734
    %v736 = vcombine.high %v727, %v734
    %v737 = vcombine.low %v113, %v115
    %v738 = vcombine.high %v113, %v115
    %v739 = vcombine.low %v117, %v119
    %v740 = vcombine.high %v117, %v119
    %v742 = vunpack.c.l.s4 1983009808
    %v743 = vunpack.c.0.s8 %v742
    %v744 = vlaneseq
    %v745 = vshrl.u32 %v744, 7
    %v746 = vsub.s32 %v743, %v745
    %v747 = vrot.slane %v737, %v746
    %v749 = vunpack.c.l.s4 1983009808
    %v750 = vunpack.c.0.s8 %v749
    %v751 = vlaneseq
    %v752 = vshrl.u32 %v751, 7
    %v753 = vsub.s32 %v750, %v752
    %v754 = vrot.slane %v738, %v753
    %v756 = vunpack.c.l.s4 1983009808
    %v757 = vunpack.c.0.s8 %v756
    %v758 = vlaneseq
    %v759 = vshrl.u32 %v758, 7
    %v760 = vsub.s32 %v757, %v759
    %v761 = vrot.slane %v739, %v760
    %v763 = vunpack.c.l.s4 1983009808
    %v764 = vunpack.c.0.s8 %v763
    %v765 = vlaneseq
    %v766 = vshrl.u32 %v765, 7
    %v767 = vsub.s32 %v764, %v766
    %v768 = vrot.slane %v740, %v767
    %v769 = vcombine.low %v747, %v761
    %v770 = vcombine.high %v747, %v761
    %v771 = vcombine.low %v754, %v768
    %v772 = vcombine.high %v754, %v768
    %v773 = vcombine.low %v114, %v116
    %v774 = vcombine.low %v118, %v120
    %v776 = vunpack.c.l.s4 1983009808
    %v777 = vunpack.c.0.s8 %v776
    %v778 = vlaneseq
    %v779 = vshrl.u32 %v778, 7
    %v780 = vsub.s32 %v777, %v779
    %v781 = vrot.slane %v773, %v780
    %v783 = vunpack.c.l.s4 1983009808
    %v784 = vunpack.c.0.s8 %v783
    %v785 = vlaneseq
    %v786 = vshrl.u32 %v785, 7
    %v787 = vsub.s32 %v784, %v786
    %v788 = vrot.slane %v774, %v787
    %v789 = vcombine.low %v781, %v788
    %v790 = vcombine.high %v781, %v788
    %v791 = vcombine.low %v121, %v123
    %v792 = vcombine.high %v121, %v123
    %v793 = vcombine.low %v125, %v127
    %v794 = vcombine.high %v125, %v127
    %v796 = vunpack.c.l.s4 1983009808
    %v797 = vunpack.c.0.s8 %v796
    %v798 = vlaneseq
    %v799 = vshrl.u32 %v798, 7
    %v800 = vsub.s32 %v797, %v799
    %v801 = vrot.slane %v791, %v800
    %v803 = vunpack.c.l.s4 1983009808
    %v804 = vunpack.c.0.s8 %v803
    %v805 = vlaneseq
    %v806 = vshrl.u32 %v805, 7
    %v807 = vsub.s32 %v804, %v806
    %v808 = vrot.slane %v792, %v807
    %v810 = vunpack.c.l.s4 1983009808
    %v811 = vunpack.c.0.s8 %v810
    %v812 = vlaneseq
    %v813 = vshrl.u32 %v812, 7
    %v814 = vsub.s32 %v811, %v813
    %v815 = vrot.slane %v793, %v814
    %v817 = vunpack.c.l.s4 1983009808
    %v818 = vunpack.c.0.s8 %v817
    %v819 = vlaneseq
    %v820 = vshrl.u32 %v819, 7
    %v821 = vsub.s32 %v818, %v820
    %v822 = vrot.slane %v794, %v821
    %v823 = vcombine.low %v801, %v815
    %v824 = vcombine.high %v801, %v815
    %v825 = vcombine.low %v808, %v822
    %v826 = vcombine.high %v808, %v822
    %v827 = vcombine.low %v122, %v124
    %v828 = vcombine.low %v126, %v128
    %v830 = vunpack.c.l.s4 1983009808
    %v831 = vunpack.c.0.s8 %v830
    %v832 = vlaneseq
    %v833 = vshrl.u32 %v832, 7
    %v834 = vsub.s32 %v831, %v833
    %v835 = vrot.slane %v827, %v834
    %v837 = vunpack.c.l.s4 1983009808
    %v838 = vunpack.c.0.s8 %v837
    %v839 = vlaneseq
    %v840 = vshrl.u32 %v839, 7
    %v841 = vsub.s32 %v838, %v840
    %v842 = vrot.slane %v828, %v841
    %v843 = vcombine.low %v835, %v842
    %v844 = vcombine.high %v835, %v842
    %v845 = vcombine.low %v129, %v131
    %v846 = vcombine.high %v129, %v131
    %v847 = vcombine.low %v133, %v135
    %v848 = vcombine.high %v133, %v135
    %v850 = vunpack.c.l.s4 1983009808
    %v851 = vunpack.c.0.s8 %v850
    %v852 = vlaneseq
    %v853 = vshrl.u32 %v852, 7
    %v854 = vsub.s32 %v851, %v853
    %v855 = vrot.slane %v845, %v854
    %v857 = vunpack.c.l.s4 1983009808
    %v858 = vunpack.c.0.s8 %v857
    %v859 = vlaneseq
    %v860 = vshrl.u32 %v859, 7
    %v861 = vsub.s32 %v858, %v860
    %v862 = vrot.slane %v846, %v861
    %v864 = vunpack.c.l.s4 1983009808
    %v865 = vunpack.c.0.s8 %v864
    %v866 = vlaneseq
    %v867 = vshrl.u32 %v866, 7
    %v868 = vsub.s32 %v865, %v867
    %v869 = vrot.slane %v847, %v868
    %v871 = vunpack.c.l.s4 1983009808
    %v872 = vunpack.c.0.s8 %v871
    %v873 = vlaneseq
    %v874 = vshrl.u32 %v873, 7
    %v875 = vsub.s32 %v872, %v874
    %v876 = vrot.slane %v848, %v875
    %v877 = vcombine.low %v855, %v869
    %v878 = vcombine.high %v855, %v869
    %v879 = vcombine.low %v862, %v876
    %v880 = vcombine.high %v862, %v876
    %v881 = vcombine.low %v130, %v132
    %v882 = vcombine.low %v134, %v136
    %v884 = vunpack.c.l.s4 1983009808
    %v885 = vunpack.c.0.s8 %v884
    %v886 = vlaneseq
    %v887 = vshrl.u32 %v886, 7
    %v888 = vsub.s32 %v885, %v887
    %v889 = vrot.slane %v881, %v888
    %v891 = vunpack.c.l.s4 1983009808
    %v892 = vunpack.c.0.s8 %v891
    %v893 = vlaneseq
    %v894 = vshrl.u32 %v893, 7
    %v895 = vsub.s32 %v892, %v894
    %v896 = vrot.slane %v882, %v895
    %v897 = vcombine.low %v889, %v896
    %v898 = vcombine.high %v889, %v896
    %v899 = vcombine.low %v137, %v139
    %v900 = vcombine.high %v137, %v139
    %v901 = vcombine.low %v141, %v143
    %v902 = vcombine.high %v141, %v143
    %v904 = vunpack.c.l.s4 1983009808
    %v905 = vunpack.c.0.s8 %v904
    %v906 = vlaneseq
    %v907 = vshrl.u32 %v906, 7
    %v908 = vsub.s32 %v905, %v907
    %v909 = vrot.slane %v899, %v908
    %v911 = vunpack.c.l.s4 1983009808
    %v912 = vunpack.c.0.s8 %v911
    %v913 = vlaneseq
    %v914 = vshrl.u32 %v913, 7
    %v915 = vsub.s32 %v912, %v914
    %v916 = vrot.slane %v900, %v915
    %v918 = vunpack.c.l.s4 1983009808
    %v919 = vunpack.c.0.s8 %v918
    %v920 = vlaneseq
    %v921 = vshrl.u32 %v920, 7
    %v922 = vsub.s32 %v919, %v921
    %v923 = vrot.slane %v901, %v922
    %v925 = vunpack.c.l.s4 1983009808
    %v926 = vunpack.c.0.s8 %v925
    %v927 = vlaneseq
    %v928 = vshrl.u32 %v927, 7
    %v929 = vsub.s32 %v926, %v928
    %v930 = vrot.slane %v902, %v929
    %v931 = vcombine.low %v909, %v923
    %v932 = vcombine.high %v909, %v923
    %v933 = vcombine.low %v916, %v930
    %v934 = vcombine.high %v916, %v930
    %v935 = vcombine.low %v138, %v140
    %v936 = vcombine.low %v142, %v144
    %v938 = vunpack.c.l.s4 1983009808
    %v939 = vunpack.c.0.s8 %v938
    %v940 = vlaneseq
    %v941 = vshrl.u32 %v940, 7
    %v942 = vsub.s32 %v939, %v941
    %v943 = vrot.slane %v935, %v942
    %v945 = vunpack.c.l.s4 1983009808
    %v946 = vunpack.c.0.s8 %v945
    %v947 = vlaneseq
    %v948 = vshrl.u32 %v947, 7
    %v949 = vsub.s32 %v946, %v948
    %v950 = vrot.slane %v936, %v949
    %v951 = vcombine.low %v943, %v950
    %v952 = vcombine.high %v943, %v950
    %v953 = vcombine.low %v145, %v147
    %v954 = vcombine.high %v145, %v147
    %v955 = vcombine.low %v149, %v151
    %v956 = vcombine.high %v149, %v151
    %v958 = vunpack.c.l.s4 1983009808
    %v959 = vunpack.c.0.s8 %v958
    %v960 = vlaneseq
    %v961 = vshrl.u32 %v960, 7
    %v962 = vsub.s32 %v959, %v961
    %v963 = vrot.slane %v953, %v962
    %v965 = vunpack.c.l.s4 1983009808
    %v966 = vunpack.c.0.s8 %v965
    %v967 = vlaneseq
    %v968 = vshrl.u32 %v967, 7
    %v969 = vsub.s32 %v966, %v968
    %v970 = vrot.slane %v954, %v969
    %v972 = vunpack.c.l.s4 1983009808
    %v973 = vunpack.c.0.s8 %v972
    %v974 = vlaneseq
    %v975 = vshrl.u32 %v974, 7
    %v976 = vsub.s32 %v973, %v975
    %v977 = vrot.slane %v955, %v976
    %v979 = vunpack.c.l.s4 1983009808
    %v980 = vunpack.c.0.s8 %v979
    %v981 = vlaneseq
    %v982 = vshrl.u32 %v981, 7
    %v983 = vsub.s32 %v980, %v982
    %v984 = vrot.slane %v956, %v983
    %v985 = vcombine.low %v963, %v977
    %v986 = vcombine.high %v963, %v977
    %v987 = vcombine.low %v970, %v984
    %v988 = vcombine.high %v970, %v984
    %v989 = vcombine.low %v146, %v148
    %v990 = vcombine.low %v150, %v152
    %v992 = vunpack.c.l.s4 1983009808
    %v993 = vunpack.c.0.s8 %v992
    %v994 = vlaneseq
    %v995 = vshrl.u32 %v994, 7
    %v996 = vsub.s32 %v993, %v995
    %v997 = vrot.slane %v989, %v996
    %v999 = vunpack.c.l.s4 1983009808
    %v1000 = vunpack.c.0.s8 %v999
    %v1001 = vlaneseq
    %v1002 = vshrl.u32 %v1001, 7
    %v1003 = vsub.s32 %v1000, %v1002
    %v1004 = vrot.slane %v990, %v1003
    %v1005 = vcombine.low %v997, %v1004
    %v1006 = vcombine.high %v997, %v1004
    %v1007 = vcombine.low %v153, %v155
    %v1008 = vcombine.high %v153, %v155
    %v1009 = vcombine.low %v157, %v159
    %v1010 = vcombine.high %v157, %v159
    %v1012 = vunpack.c.l.s4 1983009808
    %v1013 = vunpack.c.0.s8 %v1012
    %v1014 = vlaneseq
    %v1015 = vshrl.u32 %v1014, 7
    %v1016 = vsub.s32 %v1013, %v1015
    %v1017 = vrot.slane %v1007, %v1016
    %v1019 = vunpack.c.l.s4 1983009808
    %v1020 = vunpack.c.0.s8 %v1019
    %v1021 = vlaneseq
    %v1022 = vshrl.u32 %v1021, 7
    %v1023 = vsub.s32 %v1020, %v1022
    %v1024 = vrot.slane %v1008, %v1023
    %v1026 = vunpack.c.l.s4 1983009808
    %v1027 = vunpack.c.0.s8 %v1026
    %v1028 = vlaneseq
    %v1029 = vshrl.u32 %v1028, 7
    %v1030 = vsub.s32 %v1027, %v1029
    %v1031 = vrot.slane %v1009, %v1030
    %v1033 = vunpack.c.l.s4 1983009808
    %v1034 = vunpack.c.0.s8 %v1033
    %v1035 = vlaneseq
    %v1036 = vshrl.u32 %v1035, 7
    %v1037 = vsub.s32 %v1034, %v1036
    %v1038 = vrot.slane %v1010, %v1037
    %v1039 = vcombine.low %v1017, %v1031
    %v1040 = vcombine.high %v1017, %v1031
    %v1041 = vcombine.low %v1024, %v1038
    %v1042 = vcombine.high %v1024, %v1038
    %v1043 = vcombine.low %v154, %v156
    %v1044 = vcombine.low %v158, %v160
    %v1046 = vunpack.c.l.s4 1983009808
    %v1047 = vunpack.c.0.s8 %v1046
    %v1048 = vlaneseq
    %v1049 = vshrl.u32 %v1048, 7
    %v1050 = vsub.s32 %v1047, %v1049
    %v1051 = vrot.slane %v1043, %v1050
    %v1053 = vunpack.c.l.s4 1983009808
    %v1054 = vunpack.c.0.s8 %v1053
    %v1055 = vlaneseq
    %v1056 = vshrl.u32 %v1055, 7
    %v1057 = vsub.s32 %v1054, %v1056
    %v1058 = vrot.slane %v1044, %v1057
    %v1059 = vcombine.low %v1051, %v1058
    %v1060 = vcombine.high %v1051, %v1058
    %v1061 = vcombine.low %v161, %v163
    %v1062 = vcombine.high %v161, %v163
    %v1063 = vcombine.low %v165, %v167
    %v1064 = vcombine.high %v165, %v167
    %v1066 = vunpack.c.l.s4 1983009808
    %v1067 = vunpack.c.0.s8 %v1066
    %v1068 = vlaneseq
    %v1069 = vshrl.u32 %v1068, 7
    %v1070 = vsub.s32 %v1067, %v1069
    %v1071 = vrot.slane %v1061, %v1070
    %v1073 = vunpack.c.l.s4 1983009808
    %v1074 = vunpack.c.0.s8 %v1073
    %v1075 = vlaneseq
    %v1076 = vshrl.u32 %v1075, 7
    %v1077 = vsub.s32 %v1074, %v1076
    %v1078 = vrot.slane %v1062, %v1077
    %v1080 = vunpack.c.l.s4 1983009808
    %v1081 = vunpack.c.0.s8 %v1080
    %v1082 = vlaneseq
    %v1083 = vshrl.u32 %v1082, 7
    %v1084 = vsub.s32 %v1081, %v1083
    %v1085 = vrot.slane %v1063, %v1084
    %v1087 = vunpack.c.l.s4 1983009808
    %v1088 = vunpack.c.0.s8 %v1087
    %v1089 = vlaneseq
    %v1090 = vshrl.u32 %v1089, 7
    %v1091 = vsub.s32 %v1088, %v1090
    %v1092 = vrot.slane %v1064, %v1091
    %v1093 = vcombine.low %v1071, %v1085
    %v1094 = vcombine.high %v1071, %v1085
    %v1095 = vcombine.low %v1078, %v1092
    %v1096 = vcombine.high %v1078, %v1092
    %v1097 = vcombine.low %v162, %v164
    %v1098 = vcombine.low %v166, %v168
    %v1100 = vunpack.c.l.s4 1983009808
    %v1101 = vunpack.c.0.s8 %v1100
    %v1102 = vlaneseq
    %v1103 = vshrl.u32 %v1102, 7
    %v1104 = vsub.s32 %v1101, %v1103
    %v1105 = vrot.slane %v1097, %v1104
    %v1107 = vunpack.c.l.s4 1983009808
    %v1108 = vunpack.c.0.s8 %v1107
    %v1109 = vlaneseq
    %v1110 = vshrl.u32 %v1109, 7
    %v1111 = vsub.s32 %v1108, %v1110
    %v1112 = vrot.slane %v1098, %v1111
    %v1113 = vcombine.low %v1105, %v1112
    %v1114 = vcombine.high %v1105, %v1112
    %v1115 = vcombine.low %v169, %v171
    %v1116 = vcombine.high %v169, %v171
    %v1117 = vcombine.low %v173, %v175
    %v1118 = vcombine.high %v173, %v175
    %v1120 = vunpack.c.l.s4 1983009808
    %v1121 = vunpack.c.0.s8 %v1120
    %v1122 = vlaneseq
    %v1123 = vshrl.u32 %v1122, 7
    %v1124 = vsub.s32 %v1121, %v1123
    %v1125 = vrot.slane %v1115, %v1124
    %v1127 = vunpack.c.l.s4 1983009808
    %v1128 = vunpack.c.0.s8 %v1127
    %v1129 = vlaneseq
    %v1130 = vshrl.u32 %v1129, 7
    %v1131 = vsub.s32 %v1128, %v1130
    %v1132 = vrot.slane %v1116, %v1131
    %v1134 = vunpack.c.l.s4 1983009808
    %v1135 = vunpack.c.0.s8 %v1134
    %v1136 = vlaneseq
    %v1137 = vshrl.u32 %v1136, 7
    %v1138 = vsub.s32 %v1135, %v1137
    %v1139 = vrot.slane %v1117, %v1138
    %v1141 = vunpack.c.l.s4 1983009808
    %v1142 = vunpack.c.0.s8 %v1141
    %v1143 = vlaneseq
    %v1144 = vshrl.u32 %v1143, 7
    %v1145 = vsub.s32 %v1142, %v1144
    %v1146 = vrot.slane %v1118, %v1145
    %v1147 = vcombine.low %v1125, %v1139
    %v1148 = vcombine.high %v1125, %v1139
    %v1149 = vcombine.low %v1132, %v1146
    %v1150 = vcombine.high %v1132, %v1146
    %v1151 = vcombine.low %v170, %v172
    %v1152 = vcombine.low %v174, %v176
    %v1154 = vunpack.c.l.s4 1983009808
    %v1155 = vunpack.c.0.s8 %v1154
    %v1156 = vlaneseq
    %v1157 = vshrl.u32 %v1156, 7
    %v1158 = vsub.s32 %v1155, %v1157
    %v1159 = vrot.slane %v1151, %v1158
    %v1161 = vunpack.c.l.s4 1983009808
    %v1162 = vunpack.c.0.s8 %v1161
    %v1163 = vlaneseq
    %v1164 = vshrl.u32 %v1163, 7
    %v1165 = vsub.s32 %v1162, %v1164
    %v1166 = vrot.slane %v1152, %v1165
    %v1167 = vcombine.low %v1159, %v1166
    %v1168 = vcombine.high %v1159, %v1166
    %v1265 = vpack.c.bf16 %v391, %v337
    %v1266 = vpack.c.bf16 %v392, %v338
    %v1267 = vpack.c.bf16 %v393, %v339
    %v1268 = vpack.c.bf16 %v394, %v340
    %v1269 = vpack.c.bf16 %v411, %v357
    %v1270 = vpack.c.bf16 %v412, %v358
    %v1271 = vpack.c.bf16 %v499, %v445
    %v1272 = vpack.c.bf16 %v500, %v446
    %v1273 = vpack.c.bf16 %v501, %v447
    %v1274 = vpack.c.bf16 %v502, %v448
    %v1275 = vpack.c.bf16 %v519, %v465
    %v1276 = vpack.c.bf16 %v520, %v466
    %v1277 = vpack.c.bf16 %v607, %v553
    %v1278 = vpack.c.bf16 %v608, %v554
    %v1279 = vpack.c.bf16 %v609, %v555
    %v1280 = vpack.c.bf16 %v610, %v556
    %v1281 = vpack.c.bf16 %v627, %v573
    %v1282 = vpack.c.bf16 %v628, %v574
    %v1283 = vpack.c.bf16 %v715, %v661
    %v1284 = vpack.c.bf16 %v716, %v662
    %v1285 = vpack.c.bf16 %v717, %v663
    %v1286 = vpack.c.bf16 %v718, %v664
    %v1287 = vpack.c.bf16 %v735, %v681
    %v1288 = vpack.c.bf16 %v736, %v682
    %v1289 = vpack.c.bf16 %v823, %v769
    %v1290 = vpack.c.bf16 %v824, %v770
    %v1291 = vpack.c.bf16 %v825, %v771
    %v1292 = vpack.c.bf16 %v826, %v772
    %v1293 = vpack.c.bf16 %v843, %v789
    %v1294 = vpack.c.bf16 %v844, %v790
    %v1295 = vpack.c.bf16 %v931, %v877
    %v1296 = vpack.c.bf16 %v932, %v878
    %v1297 = vpack.c.bf16 %v933, %v879
    %v1298 = vpack.c.bf16 %v934, %v880
    %v1299 = vpack.c.bf16 %v951, %v897
    %v1300 = vpack.c.bf16 %v952, %v898
    %v1301 = vpack.c.bf16 %v1039, %v985
    %v1302 = vpack.c.bf16 %v1040, %v986
    %v1303 = vpack.c.bf16 %v1041, %v987
    %v1304 = vpack.c.bf16 %v1042, %v988
    %v1305 = vpack.c.bf16 %v1059, %v1005
    %v1306 = vpack.c.bf16 %v1060, %v1006
    %v1307 = vpack.c.bf16 %v1147, %v1093
    %v1308 = vpack.c.bf16 %v1148, %v1094
    %v1309 = vpack.c.bf16 %v1149, %v1095
    %v1310 = vpack.c.bf16 %v1150, %v1096
    %v1311 = vpack.c.bf16 %v1167, %v1113
    %v1312 = vpack.c.bf16 %v1168, %v1114
    %v1313 = vld [vmem:[#allocation5] sm:$0xff]
    %v1314 = vld [vmem:[#allocation5 + $0x8] sm:$0xff]
    %v1315 = vld [vmem:[#allocation5 + $0x10] sm:$0xff]
    %v1316 = vld [vmem:[#allocation5 + $0x18] sm:$0xff]
    %v1317 = vld [vmem:[#allocation5 + $0x20] sm:$0xff]
    %v1318 = vld [vmem:[#allocation5 + $0x28] sm:$0xff]
    %v1319 = vld [vmem:[#allocation5 + $0x30] sm:$0xff]
    %v1320 = vld [vmem:[#allocation5 + $0x38] sm:$0xff]
    %v1321 = vld [vmem:[#allocation5 + $0x40] sm:$0xff]
    %v1322 = vld [vmem:[#allocation5 + $0x48] sm:$0xff]
    %v1323 = vld [vmem:[#allocation5 + $0x50] sm:$0xff]
    %v1324 = vld [vmem:[#allocation5 + $0x58] sm:$0xff]
    %v1325 = vld [vmem:[#allocation5 + $0x60] sm:$0xff]
    %v1326 = vld [vmem:[#allocation5 + $0x68] sm:$0xff]
    %v1327 = vld [vmem:[#allocation5 + $0x70] sm:$0xff]
    %v1328 = vld [vmem:[#allocation5 + $0x78] sm:$0xff]
    %v1329 = vld [vmem:[#allocation5 + $0x80] sm:$0xff]
    %v1330 = vld [vmem:[#allocation5 + $0x88] sm:$0xff]
    %v1331 = vld [vmem:[#allocation5 + $0x90] sm:$0xff]
    %v1332 = vld [vmem:[#allocation5 + $0x98] sm:$0xff]
    %v1333 = vld [vmem:[#allocation5 + $0xa0] sm:$0xff]
    %v1334 = vld [vmem:[#allocation5 + $0xa8] sm:$0xff]
    %v1335 = vld [vmem:[#allocation5 + $0xb0] sm:$0xff]
    %v1336 = vld [vmem:[#allocation5 + $0xb8] sm:$0xff]
    %v1337 = vld [vmem:[#allocation5 + $0xc0] sm:$0xff]
    %v1338 = vld [vmem:[#allocation5 + $0xc8] sm:$0xff]
    %v1339 = vld [vmem:[#allocation5 + $0xd0] sm:$0xff]
    %v1340 = vld [vmem:[#allocation5 + $0xd8] sm:$0xff]
    %v1341 = vld [vmem:[#allocation5 + $0xe0] sm:$0xff]
    %v1342 = vld [vmem:[#allocation5 + $0xe8] sm:$0xff]
    %v1343 = vld [vmem:[#allocation5 + $0xf0] sm:$0xff]
    %v1344 = vld [vmem:[#allocation5 + $0xf8] sm:$0xff]
    %v1345 = vld [vmem:[#allocation5 + $0x100] sm:$0xff]
    %v1346 = vld [vmem:[#allocation5 + $0x108] sm:$0xff]
    %v1347 = vld [vmem:[#allocation5 + $0x110] sm:$0xff]
    %v1348 = vld [vmem:[#allocation5 + $0x118] sm:$0xff]
    %v1349 = vld [vmem:[#allocation5 + $0x120] sm:$0xff]
    %v1350 = vld [vmem:[#allocation5 + $0x128] sm:$0xff]
    %v1351 = vld [vmem:[#allocation5 + $0x130] sm:$0xff]
    %v1352 = vld [vmem:[#allocation5 + $0x138] sm:$0xff]
    %v1353 = vld [vmem:[#allocation5 + $0x140] sm:$0xff]
    %v1354 = vld [vmem:[#allocation5 + $0x148] sm:$0xff]
    %v1355 = vld [vmem:[#allocation5 + $0x150] sm:$0xff]
    %v1356 = vld [vmem:[#allocation5 + $0x158] sm:$0xff]
    %v1357 = vld [vmem:[#allocation5 + $0x160] sm:$0xff]
    %v1358 = vld [vmem:[#allocation5 + $0x168] sm:$0xff]
    %v1359 = vld [vmem:[#allocation5 + $0x170] sm:$0xff]
    %v1360 = vld [vmem:[#allocation5 + $0x178] sm:$0xff]
    %v1361 = vld [vmem:[#allocation5 + $0x180] sm:$0xff]
    %v1362 = vld [vmem:[#allocation5 + $0x188] sm:$0xff]
    %v1363 = vld [vmem:[#allocation5 + $0x190] sm:$0xff]
    %v1364 = vld [vmem:[#allocation5 + $0x198] sm:$0xff]
    %v1365 = vld [vmem:[#allocation5 + $0x1a0] sm:$0xff]
    %v1366 = vld [vmem:[#allocation5 + $0x1a8] sm:$0xff]
    %v1367 = vld [vmem:[#allocation5 + $0x1b0] sm:$0xff]
    %v1368 = vld [vmem:[#allocation5 + $0x1b8] sm:$0xff]
    %v1369 = vld [vmem:[#allocation5 + $0x1c0] sm:$0xff]
    %v1370 = vld [vmem:[#allocation5 + $0x1c8] sm:$0xff]
    %v1371 = vld [vmem:[#allocation5 + $0x1d0] sm:$0xff]
    %v1372 = vld [vmem:[#allocation5 + $0x1d8] sm:$0xff]
    %v1373 = vld [vmem:[#allocation5 + $0x1e0] sm:$0xff]
    %v1374 = vld [vmem:[#allocation5 + $0x1e8] sm:$0xff]
    %v1375 = vld [vmem:[#allocation5 + $0x1f0] sm:$0xff]
    %v1376 = vld [vmem:[#allocation5 + $0x1f8] sm:$0xff]
    %v1377 = vld [vmem:[#allocation5 + $0x200] sm:$0xff]
    %v1378 = vld [vmem:[#allocation5 + $0x208] sm:$0xff]
    %v1379 = vld [vmem:[#allocation5 + $0x210] sm:$0xff]
    %v1380 = vld [vmem:[#allocation5 + $0x218] sm:$0xff]
    %v1381 = vld [vmem:[#allocation5 + $0x220] sm:$0xff]
    %v1382 = vld [vmem:[#allocation5 + $0x228] sm:$0xff]
    %v1383 = vld [vmem:[#allocation5 + $0x230] sm:$0xff]
    %v1384 = vld [vmem:[#allocation5 + $0x238] sm:$0xff]
    %v1385 = vld [vmem:[#allocation5 + $0x240] sm:$0xff]
    %v1386 = vld [vmem:[#allocation5 + $0x248] sm:$0xff]
    %v1387 = vld [vmem:[#allocation5 + $0x250] sm:$0xff]
    %v1388 = vld [vmem:[#allocation5 + $0x258] sm:$0xff]
    %v1389 = vld [vmem:[#allocation5 + $0x260] sm:$0xff]
    %v1390 = vld [vmem:[#allocation5 + $0x268] sm:$0xff]
    %v1391 = vld [vmem:[#allocation5 + $0x270] sm:$0xff]
    %v1392 = vld [vmem:[#allocation5 + $0x278] sm:$0xff]
    %v1393 = vld [vmem:[#allocation5 + $0x280] sm:$0xff]
    %v1394 = vld [vmem:[#allocation5 + $0x288] sm:$0xff]
    %v1395 = vld [vmem:[#allocation5 + $0x290] sm:$0xff]
    %v1396 = vld [vmem:[#allocation5 + $0x298] sm:$0xff]
    %v1397 = vld [vmem:[#allocation5 + $0x2a0] sm:$0xff]
    %v1398 = vld [vmem:[#allocation5 + $0x2a8] sm:$0xff]
    %v1399 = vld [vmem:[#allocation5 + $0x2b0] sm:$0xff]
    %v1400 = vld [vmem:[#allocation5 + $0x2b8] sm:$0xff]
    %v1401 = vld [vmem:[#allocation5 + $0x2c0] sm:$0xff]
    %v1402 = vld [vmem:[#allocation5 + $0x2c8] sm:$0xff]
    %v1403 = vld [vmem:[#allocation5 + $0x2d0] sm:$0xff]
    %v1404 = vld [vmem:[#allocation5 + $0x2d8] sm:$0xff]
    %v1405 = vld [vmem:[#allocation5 + $0x2e0] sm:$0xff]
    %v1406 = vld [vmem:[#allocation5 + $0x2e8] sm:$0xff]
    %v1407 = vld [vmem:[#allocation5 + $0x2f0] sm:$0xff]
    %v1408 = vld [vmem:[#allocation5 + $0x2f8] sm:$0xff]
    %v1409 = vld [vmem:[%s2] sm:$0x3]
    %v1411 = vlaneseq
    %v1412 = vshrl.u32 %v1411, 7
    %v1413 = vsub.s32 0, %v1412
    %v1414 = vrot.slane %v1409, %v1413
    %v1415 = vlaneseq
    %v1416 = vshrl.u32 %v1415, 7
    %v1417 = vsub.s32 1, %v1416
    %v1418 = vrot.slane %v1409, %v1417
    %v1517 = vunpack.c.l.b16 %v1313
    %v1518 = vunpack.c.h.b16 %v1313
    %v1519 = vunpack.c.l.b16 %v1314
    %v1520 = vunpack.c.h.b16 %v1314
    %v1521 = vunpack.c.l.b16 %v1315
    %v1522 = vunpack.c.h.b16 %v1315
    %v1523 = vunpack.c.l.b16 %v1316
    %v1524 = vunpack.c.h.b16 %v1316
    %v1525 = vunpack.c.l.b16 %v1317
    %v1526 = vunpack.c.h.b16 %v1317
    %v1527 = vunpack.c.l.b16 %v1318
    %v1528 = vunpack.c.h.b16 %v1318
    %v1529 = vunpack.c.l.b16 %v1319
    %v1530 = vunpack.c.h.b16 %v1319
    %v1531 = vunpack.c.l.b16 %v1320
    %v1532 = vunpack.c.h.b16 %v1320
    %v1533 = vunpack.c.l.b16 %v1321
    %v1534 = vunpack.c.h.b16 %v1321
    %v1535 = vunpack.c.l.b16 %v1322
    %v1536 = vunpack.c.h.b16 %v1322
    %v1537 = vunpack.c.l.b16 %v1323
    %v1538 = vunpack.c.h.b16 %v1323
    %v1539 = vunpack.c.l.b16 %v1324
    %v1540 = vunpack.c.h.b16 %v1324
    %v1541 = vunpack.c.l.b16 %v1325
    %v1542 = vunpack.c.h.b16 %v1325
    %v1543 = vunpack.c.l.b16 %v1326
    %v1544 = vunpack.c.h.b16 %v1326
    %v1545 = vunpack.c.l.b16 %v1327
    %v1546 = vunpack.c.h.b16 %v1327
    %v1547 = vunpack.c.l.b16 %v1328
    %v1548 = vunpack.c.h.b16 %v1328
    %v1549 = vunpack.c.l.b16 %v1329
    %v1550 = vunpack.c.h.b16 %v1329
    %v1551 = vunpack.c.l.b16 %v1330
    %v1552 = vunpack.c.h.b16 %v1330
    %v1553 = vunpack.c.l.b16 %v1331
    %v1554 = vunpack.c.h.b16 %v1331
    %v1555 = vunpack.c.l.b16 %v1332
    %v1556 = vunpack.c.h.b16 %v1332
    %v1557 = vunpack.c.l.b16 %v1333
    %v1558 = vunpack.c.h.b16 %v1333
    %v1559 = vunpack.c.l.b16 %v1334
    %v1560 = vunpack.c.h.b16 %v1334
    %v1561 = vunpack.c.l.b16 %v1335
    %v1562 = vunpack.c.h.b16 %v1335
    %v1563 = vunpack.c.l.b16 %v1336
    %v1564 = vunpack.c.h.b16 %v1336
    %v1565 = vunpack.c.l.b16 %v1337
    %v1566 = vunpack.c.h.b16 %v1337
    %v1567 = vunpack.c.l.b16 %v1338
    %v1568 = vunpack.c.h.b16 %v1338
    %v1569 = vunpack.c.l.b16 %v1339
    %v1570 = vunpack.c.h.b16 %v1339
    %v1571 = vunpack.c.l.b16 %v1340
    %v1572 = vunpack.c.h.b16 %v1340
    %v1573 = vunpack.c.l.b16 %v1341
    %v1574 = vunpack.c.h.b16 %v1341
    %v1575 = vunpack.c.l.b16 %v1342
    %v1576 = vunpack.c.h.b16 %v1342
    %v1577 = vunpack.c.l.b16 %v1343
    %v1578 = vunpack.c.h.b16 %v1343
    %v1579 = vunpack.c.l.b16 %v1344
    %v1580 = vunpack.c.h.b16 %v1344
    %v1581 = vunpack.c.l.b16 %v1345
    %v1582 = vunpack.c.h.b16 %v1345
    %v1583 = vunpack.c.l.b16 %v1346
    %v1584 = vunpack.c.h.b16 %v1346
    %v1585 = vunpack.c.l.b16 %v1347
    %v1586 = vunpack.c.h.b16 %v1347
    %v1587 = vunpack.c.l.b16 %v1348
    %v1588 = vunpack.c.h.b16 %v1348
    %v1589 = vunpack.c.l.b16 %v1349
    %v1590 = vunpack.c.h.b16 %v1349
    %v1591 = vunpack.c.l.b16 %v1350
    %v1592 = vunpack.c.h.b16 %v1350
    %v1593 = vunpack.c.l.b16 %v1351
    %v1594 = vunpack.c.h.b16 %v1351
    %v1595 = vunpack.c.l.b16 %v1352
    %v1596 = vunpack.c.h.b16 %v1352
    %v1597 = vunpack.c.l.b16 %v1353
    %v1598 = vunpack.c.h.b16 %v1353
    %v1599 = vunpack.c.l.b16 %v1354
    %v1600 = vunpack.c.h.b16 %v1354
    %v1601 = vunpack.c.l.b16 %v1355
    %v1602 = vunpack.c.h.b16 %v1355
    %v1603 = vunpack.c.l.b16 %v1356
    %v1604 = vunpack.c.h.b16 %v1356
    %v1605 = vunpack.c.l.b16 %v1357
    %v1606 = vunpack.c.h.b16 %v1357
    %v1607 = vunpack.c.l.b16 %v1358
    %v1608 = vunpack.c.h.b16 %v1358
    %v1609 = vunpack.c.l.b16 %v1359
    %v1610 = vunpack.c.h.b16 %v1359
    %v1611 = vunpack.c.l.b16 %v1360
    %v1612 = vunpack.c.h.b16 %v1360
    %v1613 = vunpack.c.l.b16 %v1361
    %v1614 = vunpack.c.h.b16 %v1361
    %v1615 = vunpack.c.l.b16 %v1362
    %v1616 = vunpack.c.h.b16 %v1362
    %v1617 = vunpack.c.l.b16 %v1363
    %v1618 = vunpack.c.h.b16 %v1363
    %v1619 = vunpack.c.l.b16 %v1364
    %v1620 = vunpack.c.h.b16 %v1364
    %v1621 = vunpack.c.l.b16 %v1365
    %v1622 = vunpack.c.h.b16 %v1365
    %v1623 = vunpack.c.l.b16 %v1366
    %v1624 = vunpack.c.h.b16 %v1366
    %v1625 = vunpack.c.l.b16 %v1367
    %v1626 = vunpack.c.h.b16 %v1367
    %v1627 = vunpack.c.l.b16 %v1368
    %v1628 = vunpack.c.h.b16 %v1368
    %v1629 = vunpack.c.l.b16 %v1369
    %v1630 = vunpack.c.h.b16 %v1369
    %v1631 = vunpack.c.l.b16 %v1370
    %v1632 = vunpack.c.h.b16 %v1370
    %v1633 = vunpack.c.l.b16 %v1371
    %v1634 = vunpack.c.h.b16 %v1371
    %v1635 = vunpack.c.l.b16 %v1372
    %v1636 = vunpack.c.h.b16 %v1372
    %v1637 = vunpack.c.l.b16 %v1373
    %v1638 = vunpack.c.h.b16 %v1373
    %v1639 = vunpack.c.l.b16 %v1374
    %v1640 = vunpack.c.h.b16 %v1374
    %v1641 = vunpack.c.l.b16 %v1375
    %v1642 = vunpack.c.h.b16 %v1375
    %v1643 = vunpack.c.l.b16 %v1376
    %v1644 = vunpack.c.h.b16 %v1376
    %v1645 = vunpack.c.l.b16 %v1377
    %v1646 = vunpack.c.h.b16 %v1377
    %v1647 = vunpack.c.l.b16 %v1378
    %v1648 = vunpack.c.h.b16 %v1378
    %v1649 = vunpack.c.l.b16 %v1379
    %v1650 = vunpack.c.h.b16 %v1379
    %v1651 = vunpack.c.l.b16 %v1380
    %v1652 = vunpack.c.h.b16 %v1380
    %v1653 = vunpack.c.l.b16 %v1381
    %v1654 = vunpack.c.h.b16 %v1381
    %v1655 = vunpack.c.l.b16 %v1382
    %v1656 = vunpack.c.h.b16 %v1382
    %v1657 = vunpack.c.l.b16 %v1383
    %v1658 = vunpack.c.h.b16 %v1383
    %v1659 = vunpack.c.l.b16 %v1384
    %v1660 = vunpack.c.h.b16 %v1384
    %v1661 = vunpack.c.l.b16 %v1385
    %v1662 = vunpack.c.h.b16 %v1385
    %v1663 = vunpack.c.l.b16 %v1386
    %v1664 = vunpack.c.h.b16 %v1386
    %v1665 = vunpack.c.l.b16 %v1387
    %v1666 = vunpack.c.h.b16 %v1387
    %v1667 = vunpack.c.l.b16 %v1388
    %v1668 = vunpack.c.h.b16 %v1388
    %v1669 = vunpack.c.l.b16 %v1389
    %v1670 = vunpack.c.h.b16 %v1389
    %v1671 = vunpack.c.l.b16 %v1390
    %v1672 = vunpack.c.h.b16 %v1390
    %v1673 = vunpack.c.l.b16 %v1391
    %v1674 = vunpack.c.h.b16 %v1391
    %v1675 = vunpack.c.l.b16 %v1392
    %v1676 = vunpack.c.h.b16 %v1392
    %v1677 = vunpack.c.l.b16 %v1393
    %v1678 = vunpack.c.h.b16 %v1393
    %v1679 = vunpack.c.l.b16 %v1394
    %v1680 = vunpack.c.h.b16 %v1394
    %v1681 = vunpack.c.l.b16 %v1395
    %v1682 = vunpack.c.h.b16 %v1395
    %v1683 = vunpack.c.l.b16 %v1396
    %v1684 = vunpack.c.h.b16 %v1396
    %v1685 = vunpack.c.l.b16 %v1397
    %v1686 = vunpack.c.h.b16 %v1397
    %v1687 = vunpack.c.l.b16 %v1398
    %v1688 = vunpack.c.h.b16 %v1398
    %v1689 = vunpack.c.l.b16 %v1399
    %v1690 = vunpack.c.h.b16 %v1399
    %v1691 = vunpack.c.l.b16 %v1400
    %v1692 = vunpack.c.h.b16 %v1400
    %v1693 = vunpack.c.l.b16 %v1401
    %v1694 = vunpack.c.h.b16 %v1401
    %v1695 = vunpack.c.l.b16 %v1402
    %v1696 = vunpack.c.h.b16 %v1402
    %v1697 = vunpack.c.l.b16 %v1403
    %v1698 = vunpack.c.h.b16 %v1403
    %v1699 = vunpack.c.l.b16 %v1404
    %v1700 = vunpack.c.h.b16 %v1404
    %v1701 = vunpack.c.l.b16 %v1405
    %v1702 = vunpack.c.h.b16 %v1405
    %v1703 = vunpack.c.l.b16 %v1406
    %v1704 = vunpack.c.h.b16 %v1406
    %v1705 = vunpack.c.l.b16 %v1407
    %v1706 = vunpack.c.h.b16 %v1407
    %v1707 = vunpack.c.l.b16 %v1408
    %v1708 = vunpack.c.h.b16 %v1408
    %v1709 = vpack.c.b16 %v1519, %v1517
    %v1710 = vpack.c.b16 %v1520, %v1518
    %v1711 = vpack.c.b16 %v1523, %v1521
    %v1712 = vpack.c.b16 %v1524, %v1522
    %v1713 = vpack.c.b16 %v1527, %v1525
    %v1714 = vpack.c.b16 %v1528, %v1526
    %v1715 = vpack.c.b16 %v1531, %v1529
    %v1716 = vpack.c.b16 %v1532, %v1530
    %v1717 = vpack.c.b16 %v1535, %v1533
    %v1718 = vpack.c.b16 %v1536, %v1534
    %v1719 = vpack.c.b16 %v1539, %v1537
    %v1720 = vpack.c.b16 %v1540, %v1538
    %v1721 = vpack.c.b16 %v1543, %v1541
    %v1722 = vpack.c.b16 %v1544, %v1542
    %v1723 = vpack.c.b16 %v1547, %v1545
    %v1724 = vpack.c.b16 %v1548, %v1546
    %v1725 = vpack.c.b16 %v1551, %v1549
    %v1726 = vpack.c.b16 %v1552, %v1550
    %v1727 = vpack.c.b16 %v1555, %v1553
    %v1728 = vpack.c.b16 %v1556, %v1554
    %v1729 = vpack.c.b16 %v1559, %v1557
    %v1730 = vpack.c.b16 %v1560, %v1558
    %v1731 = vpack.c.b16 %v1563, %v1561
    %v1732 = vpack.c.b16 %v1564, %v1562
    %v1733 = vpack.c.b16 %v1567, %v1565
    %v1734 = vpack.c.b16 %v1568, %v1566
    %v1735 = vpack.c.b16 %v1571, %v1569
    %v1736 = vpack.c.b16 %v1572, %v1570
    %v1737 = vpack.c.b16 %v1575, %v1573
    %v1738 = vpack.c.b16 %v1576, %v1574
    %v1739 = vpack.c.b16 %v1579, %v1577
    %v1740 = vpack.c.b16 %v1580, %v1578
    %v1741 = vpack.c.b16 %v1583, %v1581
    %v1742 = vpack.c.b16 %v1584, %v1582
    %v1743 = vpack.c.b16 %v1587, %v1585
    %v1744 = vpack.c.b16 %v1588, %v1586
    %v1745 = vpack.c.b16 %v1591, %v1589
    %v1746 = vpack.c.b16 %v1592, %v1590
    %v1747 = vpack.c.b16 %v1595, %v1593
    %v1748 = vpack.c.b16 %v1596, %v1594
    %v1749 = vpack.c.b16 %v1599, %v1597
    %v1750 = vpack.c.b16 %v1600, %v1598
    %v1751 = vpack.c.b16 %v1603, %v1601
    %v1752 = vpack.c.b16 %v1604, %v1602
    %v1753 = vpack.c.b16 %v1607, %v1605
    %v1754 = vpack.c.b16 %v1608, %v1606
    %v1755 = vpack.c.b16 %v1611, %v1609
    %v1756 = vpack.c.b16 %v1612, %v1610
    %v1757 = vpack.c.b16 %v1615, %v1613
    %v1758 = vpack.c.b16 %v1616, %v1614
    %v1759 = vpack.c.b16 %v1619, %v1617
    %v1760 = vpack.c.b16 %v1620, %v1618
    %v1761 = vpack.c.b16 %v1623, %v1621
    %v1762 = vpack.c.b16 %v1624, %v1622
    %v1763 = vpack.c.b16 %v1627, %v1625
    %v1764 = vpack.c.b16 %v1628, %v1626
    %v1765 = vpack.c.b16 %v1631, %v1629
    %v1766 = vpack.c.b16 %v1632, %v1630
    %v1767 = vpack.c.b16 %v1635, %v1633
    %v1768 = vpack.c.b16 %v1636, %v1634
    %v1769 = vpack.c.b16 %v1639, %v1637
    %v1770 = vpack.c.b16 %v1640, %v1638
    %v1771 = vpack.c.b16 %v1643, %v1641
    %v1772 = vpack.c.b16 %v1644, %v1642
    %v1773 = vpack.c.b16 %v1647, %v1645
    %v1774 = vpack.c.b16 %v1648, %v1646
    %v1775 = vpack.c.b16 %v1651, %v1649
    %v1776 = vpack.c.b16 %v1652, %v1650
    %v1777 = vpack.c.b16 %v1655, %v1653
    %v1778 = vpack.c.b16 %v1656, %v1654
    %v1779 = vpack.c.b16 %v1659, %v1657
    %v1780 = vpack.c.b16 %v1660, %v1658
    %v1781 = vpack.c.b16 %v1663, %v1661
    %v1782 = vpack.c.b16 %v1664, %v1662
    %v1783 = vpack.c.b16 %v1667, %v1665
    %v1784 = vpack.c.b16 %v1668, %v1666
    %v1785 = vpack.c.b16 %v1671, %v1669
    %v1786 = vpack.c.b16 %v1672, %v1670
    %v1787 = vpack.c.b16 %v1675, %v1673
    %v1788 = vpack.c.b16 %v1676, %v1674
    %v1789 = vpack.c.b16 %v1679, %v1677
    %v1790 = vpack.c.b16 %v1680, %v1678
    %v1791 = vpack.c.b16 %v1683, %v1681
    %v1792 = vpack.c.b16 %v1684, %v1682
    %v1793 = vpack.c.b16 %v1687, %v1685
    %v1794 = vpack.c.b16 %v1688, %v1686
    %v1795 = vpack.c.b16 %v1691, %v1689
    %v1796 = vpack.c.b16 %v1692, %v1690
    %v1797 = vpack.c.b16 %v1695, %v1693
    %v1798 = vpack.c.b16 %v1696, %v1694
    %v1799 = vpack.c.b16 %v1699, %v1697
    %v1800 = vpack.c.b16 %v1700, %v1698
    %v1801 = vpack.c.b16 %v1703, %v1701
    %v1802 = vpack.c.b16 %v1704, %v1702
    %v1803 = vpack.c.b16 %v1707, %v1705
    %v1804 = vpack.c.b16 %v1708, %v1706
    %1901 = vmatprep.subr.bf16.mxu0 %v1724
    %1902 = vmatpush1.bf16.msra.mxu0 %v1723
    %1903 = vmatprep.subr.bf16.mxu0 %v1722
    %1904 = vmatpush1.bf16.msra.mxu0 %v1721
    %1905 = vmatprep.subr.bf16.mxu0 %v1720
    %1906 = vmatpush1.bf16.msra.mxu0 %v1719
    %1907 = vmatprep.subr.bf16.mxu0 %v1718
    %1908 = vmatpush1.bf16.msra.mxu0 %v1717
    %1909 = vmatprep.subr.bf16.mxu0 %v1716
    %1910 = vmatpush1.bf16.msra.mxu0 %v1715
    %1911 = vmatprep.subr.bf16.mxu0 %v1714
    %1912 = vmatpush1.bf16.msra.mxu0 %v1713
    %1913 = vmatprep.subr.bf16.mxu0 %v1712
    %1914 = vmatpush1.bf16.msra.mxu0 %v1711
    %1915 = vmatprep.subr.bf16.mxu0 %v1710
    %1916 = vmatpush1.bf16.msra.mxu0 %v1709
    %1917 = vmatprep.subr.bf16.mxu0 %v1740
    %1918 = vmatpush2.bf16.msra.mxu0 %v1739
    %1919 = vmatprep.subr.bf16.mxu0 %v1738
    %1920 = vmatpush2.bf16.msra.mxu0 %v1737
    %1921 = vmatprep.subr.bf16.mxu0 %v1736
    %1922 = vmatpush2.bf16.msra.mxu0 %v1735
    %1923 = vmatprep.subr.bf16.mxu0 %v1734
    %1924 = vmatpush2.bf16.msra.mxu0 %v1733
    %1925 = vmatprep.subr.bf16.mxu0 %v1732
    %1926 = vmatpush2.bf16.msra.mxu0 %v1731
    %1927 = vmatprep.subr.bf16.mxu0 %v1730
    %1928 = vmatpush2.bf16.msra.mxu0 %v1729
    %1929 = vmatprep.subr.bf16.mxu0 %v1728
    %1930 = vmatpush2.bf16.msra.mxu0 %v1727
    %1931 = vmatprep.subr.bf16.mxu0 %v1726
    %1932 = vmatpush2.bf16.msra.mxu0 %v1725
    %1933 = vmatprep.mubr.bf16.mxu0 %v1266
    %1934 = vmatmul.mubr.bf16.gmra.mxu0 %v1265
    %v1935 = vpop.f32.mrf.mxu0
    %v1936 = vadd.f32 %v1414, %v1935
    %v1937 = vpop.f32.mrf.mxu0
    %v1938 = vadd.f32 %v1418, %v1937
    %v1939 = vpop.f32.mrf.mxu0
    %v1940 = vadd.f32 %v1414, %v1939
    %v1941 = vpop.f32.mrf.mxu0
    %v1942 = vadd.f32 %v1418, %v1941
    %1943 = vmatprep.mubr.bf16.mxu0 %v1272
    %1944 = vmatmul.mubr.bf16.gmra.mxu0 %v1271
    %v1945 = vpop.f32.mrf.mxu0
    %v1946 = vadd.f32 %v1414, %v1945
    %v1947 = vpop.f32.mrf.mxu0
    %v1948 = vadd.f32 %v1418, %v1947
    %v1949 = vpop.f32.mrf.mxu0
    %v1950 = vadd.f32 %v1414, %v1949
    %v1951 = vpop.f32.mrf.mxu0
    %v1952 = vadd.f32 %v1418, %v1951
    %1953 = vmatprep.mubr.bf16.mxu0 %v1278
    %1954 = vmatmul.mubr.bf16.gmra.mxu0 %v1277
    %v1955 = vpop.f32.mrf.mxu0
    %v1956 = vadd.f32 %v1414, %v1955
    %v1957 = vpop.f32.mrf.mxu0
    %v1958 = vadd.f32 %v1418, %v1957
    %v1959 = vpop.f32.mrf.mxu0
    %v1960 = vadd.f32 %v1414, %v1959
    %v1961 = vpop.f32.mrf.mxu0
    %v1962 = vadd.f32 %v1418, %v1961
    %1963 = vmatprep.mubr.bf16.mxu0 %v1284
    %1964 = vmatmul.mubr.bf16.gmra.mxu0 %v1283
    %v1965 = vpop.f32.mrf.mxu0
    %v1966 = vadd.f32 %v1414, %v1965
    %v1967 = vpop.f32.mrf.mxu0
    %v1968 = vadd.f32 %v1418, %v1967
    %v1969 = vpop.f32.mrf.mxu0
    %v1970 = vadd.f32 %v1414, %v1969
    %v1971 = vpop.f32.mrf.mxu0
    %v1972 = vadd.f32 %v1418, %v1971
    %1973 = vmatprep.mubr.bf16.mxu0 %v1290
    %1974 = vmatmul.mubr.bf16.gmra.mxu0 %v1289
    %v1975 = vpop.f32.mrf.mxu0
    %v1976 = vadd.f32 %v1414, %v1975
    %v1977 = vpop.f32.mrf.mxu0
    %v1978 = vadd.f32 %v1418, %v1977
    %v1979 = vpop.f32.mrf.mxu0
    %v1980 = vadd.f32 %v1414, %v1979
    %v1981 = vpop.f32.mrf.mxu0
    %v1982 = vadd.f32 %v1418, %v1981
    %1983 = vmatprep.mubr.bf16.mxu0 %v1296
    %1984 = vmatmul.mubr.bf16.gmra.mxu0 %v1295
    %v1985 = vpop.f32.mrf.mxu0
    %v1986 = vadd.f32 %v1414, %v1985
    %v1987 = vpop.f32.mrf.mxu0
    %v1988 = vadd.f32 %v1418, %v1987
    %v1989 = vpop.f32.mrf.mxu0
    %v1990 = vadd.f32 %v1414, %v1989
    %v1991 = vpop.f32.mrf.mxu0
    %v1992 = vadd.f32 %v1418, %v1991
    %1993 = vmatprep.mubr.bf16.mxu0 %v1302
    %1994 = vmatmul.mubr.bf16.gmra.mxu0 %v1301
    %v1995 = vpop.f32.mrf.mxu0
    %v1996 = vadd.f32 %v1414, %v1995
    %v1997 = vpop.f32.mrf.mxu0
    %v1998 = vadd.f32 %v1418, %v1997
    %v1999 = vpop.f32.mrf.mxu0
    %v2000 = vadd.f32 %v1414, %v1999
    %v2001 = vpop.f32.mrf.mxu0
    %v2002 = vadd.f32 %v1418, %v2001
    %2003 = vmatprep.mubr.bf16.mxu0 %v1308
    %2004 = vmatmul.mubr.bf16.gmra.mxu0 %v1307
    %v2005 = vpop.f32.mrf.mxu0
    %v2006 = vadd.f32 %v1414, %v2005
    %v2007 = vpop.f32.mrf.mxu0
    %v2008 = vadd.f32 %v1418, %v2007
    %v2009 = vpop.f32.mrf.mxu0
    %v2010 = vadd.f32 %v1414, %v2009
    %v2011 = vpop.f32.mrf.mxu0
    %v2012 = vadd.f32 %v1418, %v2011
    %2013 = vdwg.mxu0
    %2014 = vmatprep.subr.bf16.mxu0 %v1756
    %2015 = vmatpush1.bf16.msra.mxu0 %v1755
    %2016 = vmatprep.subr.bf16.mxu0 %v1754
    %2017 = vmatpush1.bf16.msra.mxu0 %v1753
    %2018 = vmatprep.subr.bf16.mxu0 %v1752
    %2019 = vmatpush1.bf16.msra.mxu0 %v1751
    %2020 = vmatprep.subr.bf16.mxu0 %v1750
    %2021 = vmatpush1.bf16.msra.mxu0 %v1749
    %2022 = vmatprep.subr.bf16.mxu0 %v1748
    %2023 = vmatpush1.bf16.msra.mxu0 %v1747
    %2024 = vmatprep.subr.bf16.mxu0 %v1746
    %2025 = vmatpush1.bf16.msra.mxu0 %v1745
    %2026 = vmatprep.subr.bf16.mxu0 %v1744
    %2027 = vmatpush1.bf16.msra.mxu0 %v1743
    %2028 = vmatprep.subr.bf16.mxu0 %v1742
    %2029 = vmatpush1.bf16.msra.mxu0 %v1741
    %2030 = vmatprep.subr.bf16.mxu0 %v1772
    %2031 = vmatpush2.bf16.msra.mxu0 %v1771
    %2032 = vmatprep.subr.bf16.mxu0 %v1770
    %2033 = vmatpush2.bf16.msra.mxu0 %v1769
    %2034 = vmatprep.subr.bf16.mxu0 %v1768
    %2035 = vmatpush2.bf16.msra.mxu0 %v1767
    %2036 = vmatprep.subr.bf16.mxu0 %v1766
    %2037 = vmatpush2.bf16.msra.mxu0 %v1765
    %2038 = vmatprep.subr.bf16.mxu0 %v1764
    %2039 = vmatpush2.bf16.msra.mxu0 %v1763
    %2040 = vmatprep.subr.bf16.mxu0 %v1762
    %2041 = vmatpush2.bf16.msra.mxu0 %v1761
    %2042 = vmatprep.subr.bf16.mxu0 %v1760
    %2043 = vmatpush2.bf16.msra.mxu0 %v1759
    %2044 = vmatprep.subr.bf16.mxu0 %v1758
    %2045 = vmatpush2.bf16.msra.mxu0 %v1757
    %2046 = vmatprep.mubr.bf16.mxu0 %v1268
    %2047 = vmatmul.mubr.bf16.gmra.mxu0 %v1267
    %v2048 = vpop.f32.mrf.mxu0
    %v2049 = vadd.f32 %v1936, %v2048
    %v2050 = vpop.f32.mrf.mxu0
    %v2051 = vadd.f32 %v1938, %v2050
    %v2052 = vpop.f32.mrf.mxu0
    %v2053 = vadd.f32 %v1940, %v2052
    %v2054 = vpop.f32.mrf.mxu0
    %v2055 = vadd.f32 %v1942, %v2054
    %2056 = vmatprep.mubr.bf16.mxu0 %v1274
    %2057 = vmatmul.mubr.bf16.gmra.mxu0 %v1273
    %v2058 = vpop.f32.mrf.mxu0
    %v2059 = vadd.f32 %v1946, %v2058
    %v2060 = vpop.f32.mrf.mxu0
    %v2061 = vadd.f32 %v1948, %v2060
    %v2062 = vpop.f32.mrf.mxu0
    %v2063 = vadd.f32 %v1950, %v2062
    %v2064 = vpop.f32.mrf.mxu0
    %v2065 = vadd.f32 %v1952, %v2064
    %2066 = vmatprep.mubr.bf16.mxu0 %v1280
    %2067 = vmatmul.mubr.bf16.gmra.mxu0 %v1279
    %v2068 = vpop.f32.mrf.mxu0
    %v2069 = vadd.f32 %v1956, %v2068
    %v2070 = vpop.f32.mrf.mxu0
    %v2071 = vadd.f32 %v1958, %v2070
    %v2072 = vpop.f32.mrf.mxu0
    %v2073 = vadd.f32 %v1960, %v2072
    %v2074 = vpop.f32.mrf.mxu0
    %v2075 = vadd.f32 %v1962, %v2074
    %2076 = vmatprep.mubr.bf16.mxu0 %v1286
    %2077 = vmatmul.mubr.bf16.gmra.mxu0 %v1285
    %v2078 = vpop.f32.mrf.mxu0
    %v2079 = vadd.f32 %v1966, %v2078
    %v2080 = vpop.f32.mrf.mxu0
    %v2081 = vadd.f32 %v1968, %v2080
    %v2082 = vpop.f32.mrf.mxu0
    %v2083 = vadd.f32 %v1970, %v2082
    %v2084 = vpop.f32.mrf.mxu0
    %v2085 = vadd.f32 %v1972, %v2084
    %2086 = vmatprep.mubr.bf16.mxu0 %v1292
    %2087 = vmatmul.mubr.bf16.gmra.mxu0 %v1291
    %v2088 = vpop.f32.mrf.mxu0
    %v2089 = vadd.f32 %v1976, %v2088
    %v2090 = vpop.f32.mrf.mxu0
    %v2091 = vadd.f32 %v1978, %v2090
    %v2092 = vpop.f32.mrf.mxu0
    %v2093 = vadd.f32 %v1980, %v2092
    %v2094 = vpop.f32.mrf.mxu0
    %v2095 = vadd.f32 %v1982, %v2094
    %2096 = vmatprep.mubr.bf16.mxu0 %v1298
    %2097 = vmatmul.mubr.bf16.gmra.mxu0 %v1297
    %v2098 = vpop.f32.mrf.mxu0
    %v2099 = vadd.f32 %v1986, %v2098
    %v2100 = vpop.f32.mrf.mxu0
    %v2101 = vadd.f32 %v1988, %v2100
    %v2102 = vpop.f32.mrf.mxu0
    %v2103 = vadd.f32 %v1990, %v2102
    %v2104 = vpop.f32.mrf.mxu0
    %v2105 = vadd.f32 %v1992, %v2104
    %2106 = vmatprep.mubr.bf16.mxu0 %v1304
    %2107 = vmatmul.mubr.bf16.gmra.mxu0 %v1303
    %v2108 = vpop.f32.mrf.mxu0
    %v2109 = vadd.f32 %v1996, %v2108
    %v2110 = vpop.f32.mrf.mxu0
    %v2111 = vadd.f32 %v1998, %v2110
    %v2112 = vpop.f32.mrf.mxu0
    %v2113 = vadd.f32 %v2000, %v2112
    %v2114 = vpop.f32.mrf.mxu0
    %v2115 = vadd.f32 %v2002, %v2114
    %2116 = vmatprep.mubr.bf16.mxu0 %v1310
    %2117 = vmatmul.mubr.bf16.gmra.mxu0 %v1309
    %v2118 = vpop.f32.mrf.mxu0
    %v2119 = vadd.f32 %v2006, %v2118
    %v2120 = vpop.f32.mrf.mxu0
    %v2121 = vadd.f32 %v2008, %v2120
    %v2122 = vpop.f32.mrf.mxu0
    %v2123 = vadd.f32 %v2010, %v2122
    %v2124 = vpop.f32.mrf.mxu0
    %v2125 = vadd.f32 %v2012, %v2124
    %2126 = vdwg.mxu0
    %2127 = vmatprep.subr.bf16.mxu0 %v1788
    %2128 = vmatpush1.bf16.msra.mxu0 %v1787
    %2129 = vmatprep.subr.bf16.mxu0 %v1786
    %2130 = vmatpush1.bf16.msra.mxu0 %v1785
    %2131 = vmatprep.subr.bf16.mxu0 %v1784
    %2132 = vmatpush1.bf16.msra.mxu0 %v1783
    %2133 = vmatprep.subr.bf16.mxu0 %v1782
    %2134 = vmatpush1.bf16.msra.mxu0 %v1781
    %2135 = vmatprep.subr.bf16.mxu0 %v1780
    %2136 = vmatpush1.bf16.msra.mxu0 %v1779
    %2137 = vmatprep.subr.bf16.mxu0 %v1778
    %2138 = vmatpush1.bf16.msra.mxu0 %v1777
    %2139 = vmatprep.subr.bf16.mxu0 %v1776
    %2140 = vmatpush1.bf16.msra.mxu0 %v1775
    %2141 = vmatprep.subr.bf16.mxu0 %v1774
    %2142 = vmatpush1.bf16.msra.mxu0 %v1773
    %2143 = vmatprep.subr.bf16.mxu0 %v1804
    %2144 = vmatpush2.bf16.msra.mxu0 %v1803
    %2145 = vmatprep.subr.bf16.mxu0 %v1802
    %2146 = vmatpush2.bf16.msra.mxu0 %v1801
    %2147 = vmatprep.subr.bf16.mxu0 %v1800
    %2148 = vmatpush2.bf16.msra.mxu0 %v1799
    %2149 = vmatprep.subr.bf16.mxu0 %v1798
    %2150 = vmatpush2.bf16.msra.mxu0 %v1797
    %2151 = vmatprep.subr.bf16.mxu0 %v1796
    %2152 = vmatpush2.bf16.msra.mxu0 %v1795
    %2153 = vmatprep.subr.bf16.mxu0 %v1794
    %2154 = vmatpush2.bf16.msra.mxu0 %v1793
    %2155 = vmatprep.subr.bf16.mxu0 %v1792
    %2156 = vmatpush2.bf16.msra.mxu0 %v1791
    %2157 = vmatprep.subr.bf16.mxu0 %v1790
    %2158 = vmatpush2.bf16.msra.mxu0 %v1789
    %2159 = vmatprep.mubr.bf16.mxu0 %v1270
    %2160 = vmatmul.mubr.bf16.gmra.mxu0 %v1269
    %v2161 = vpop.f32.mrf.mxu0
    %v2162 = vadd.f32 %v2049, %v2161
    %v2163 = vpop.f32.mrf.mxu0
    %v2164 = vadd.f32 %v2051, %v2163
    %v2165 = vpop.f32.mrf.mxu0
    %v2166 = vadd.f32 %v2053, %v2165
    %v2167 = vpop.f32.mrf.mxu0
    %v2168 = vadd.f32 %v2055, %v2167
    %2169 = vmatprep.mubr.bf16.mxu0 %v1276
    %2170 = vmatmul.mubr.bf16.gmra.mxu0 %v1275
    %v2171 = vpop.f32.mrf.mxu0
    %v2172 = vadd.f32 %v2059, %v2171
    %v2173 = vpop.f32.mrf.mxu0
    %v2174 = vadd.f32 %v2061, %v2173
    %v2175 = vpop.f32.mrf.mxu0
    %v2176 = vadd.f32 %v2063, %v2175
    %v2177 = vpop.f32.mrf.mxu0
    %v2178 = vadd.f32 %v2065, %v2177
    %2179 = vmatprep.mubr.bf16.mxu0 %v1282
    %2180 = vmatmul.mubr.bf16.gmra.mxu0 %v1281
    %v2181 = vpop.f32.mrf.mxu0
    %v2182 = vadd.f32 %v2069, %v2181
    %v2183 = vpop.f32.mrf.mxu0
    %v2184 = vadd.f32 %v2071, %v2183
    %v2185 = vpop.f32.mrf.mxu0
    %v2186 = vadd.f32 %v2073, %v2185
    %v2187 = vpop.f32.mrf.mxu0
    %v2188 = vadd.f32 %v2075, %v2187
    %2189 = vmatprep.mubr.bf16.mxu0 %v1288
    %2190 = vmatmul.mubr.bf16.gmra.mxu0 %v1287
    %v2191 = vpop.f32.mrf.mxu0
    %v2192 = vadd.f32 %v2079, %v2191
    %v2193 = vpop.f32.mrf.mxu0
    %v2194 = vadd.f32 %v2081, %v2193
    %v2195 = vpop.f32.mrf.mxu0
    %v2196 = vadd.f32 %v2083, %v2195
    %v2197 = vpop.f32.mrf.mxu0
    %v2198 = vadd.f32 %v2085, %v2197
    %2199 = vmatprep.mubr.bf16.mxu0 %v1294
    %2200 = vmatmul.mubr.bf16.gmra.mxu0 %v1293
    %v2201 = vpop.f32.mrf.mxu0
    %v2202 = vadd.f32 %v2089, %v2201
    %v2203 = vpop.f32.mrf.mxu0
    %v2204 = vadd.f32 %v2091, %v2203
    %v2205 = vpop.f32.mrf.mxu0
    %v2206 = vadd.f32 %v2093, %v2205
    %v2207 = vpop.f32.mrf.mxu0
    %v2208 = vadd.f32 %v2095, %v2207
    %2209 = vmatprep.mubr.bf16.mxu0 %v1300
    %2210 = vmatmul.mubr.bf16.gmra.mxu0 %v1299
    %v2211 = vpop.f32.mrf.mxu0
    %v2212 = vadd.f32 %v2099, %v2211
    %v2213 = vpop.f32.mrf.mxu0
    %v2214 = vadd.f32 %v2101, %v2213
    %v2215 = vpop.f32.mrf.mxu0
    %v2216 = vadd.f32 %v2103, %v2215
    %v2217 = vpop.f32.mrf.mxu0
    %v2218 = vadd.f32 %v2105, %v2217
    %2219 = vmatprep.mubr.bf16.mxu0 %v1306
    %2220 = vmatmul.mubr.bf16.gmra.mxu0 %v1305
    %v2221 = vpop.f32.mrf.mxu0
    %v2222 = vadd.f32 %v2109, %v2221
    %v2223 = vpop.f32.mrf.mxu0
    %v2224 = vadd.f32 %v2111, %v2223
    %v2225 = vpop.f32.mrf.mxu0
    %v2226 = vadd.f32 %v2113, %v2225
    %v2227 = vpop.f32.mrf.mxu0
    %v2228 = vadd.f32 %v2115, %v2227
    %2229 = vmatprep.mubr.bf16.mxu0 %v1312
    %2230 = vmatmul.mubr.bf16.gmra.mxu0 %v1311
    %v2231 = vpop.f32.mrf.mxu0
    %v2232 = vadd.f32 %v2119, %v2231
    %v2233 = vpop.f32.mrf.mxu0
    %v2234 = vadd.f32 %v2121, %v2233
    %v2235 = vpop.f32.mrf.mxu0
    %v2236 = vadd.f32 %v2123, %v2235
    %v2237 = vpop.f32.mrf.mxu0
    %v2238 = vadd.f32 %v2125, %v2237
    %2239 = vdwg.mxu0
    %vm2240 = vcmp.ge.f32.partialorder %v2162, 0.0
    %vm2241 = vcmp.ge.f32.partialorder %v2164, 0.0
    %vm2242 = vcmp.ge.f32.partialorder %v2166, 0.0
    %vm2243 = vcmp.ge.f32.partialorder %v2168, 0.0
    %vm2244 = vcmp.ge.f32.partialorder %v2172, 0.0
    %vm2245 = vcmp.ge.f32.partialorder %v2174, 0.0
    %vm2246 = vcmp.ge.f32.partialorder %v2176, 0.0
    %vm2247 = vcmp.ge.f32.partialorder %v2178, 0.0
    %vm2248 = vcmp.ge.f32.partialorder %v2182, 0.0
    %vm2249 = vcmp.ge.f32.partialorder %v2184, 0.0
    %vm2250 = vcmp.ge.f32.partialorder %v2186, 0.0
    %vm2251 = vcmp.ge.f32.partialorder %v2188, 0.0
    %vm2252 = vcmp.ge.f32.partialorder %v2192, 0.0
    %vm2253 = vcmp.ge.f32.partialorder %v2194, 0.0
    %vm2254 = vcmp.ge.f32.partialorder %v2196, 0.0
    %vm2255 = vcmp.ge.f32.partialorder %v2198, 0.0
    %vm2256 = vcmp.ge.f32.partialorder %v2202, 0.0
    %vm2257 = vcmp.ge.f32.partialorder %v2204, 0.0
    %vm2258 = vcmp.ge.f32.partialorder %v2206, 0.0
    %vm2259 = vcmp.ge.f32.partialorder %v2208, 0.0
    %vm2260 = vcmp.ge.f32.partialorder %v2212, 0.0
    %vm2261 = vcmp.ge.f32.partialorder %v2214, 0.0
    %vm2262 = vcmp.ge.f32.partialorder %v2216, 0.0
    %vm2263 = vcmp.ge.f32.partialorder %v2218, 0.0
    %vm2264 = vcmp.ge.f32.partialorder %v2222, 0.0
    %vm2265 = vcmp.ge.f32.partialorder %v2224, 0.0
    %vm2266 = vcmp.ge.f32.partialorder %v2226, 0.0
    %vm2267 = vcmp.ge.f32.partialorder %v2228, 0.0
    %vm2268 = vcmp.ge.f32.partialorder %v2232, 0.0
    %vm2269 = vcmp.ge.f32.partialorder %v2234, 0.0
    %vm2270 = vcmp.ge.f32.partialorder %v2236, 0.0
    %vm2271 = vcmp.ge.f32.partialorder %v2238, 0.0
    %v2272 = vsub.f32 0.0, %v2162
    %v2273 = vsub.f32 0.0, %v2164
    %v2274 = vsub.f32 0.0, %v2166
    %v2275 = vsub.f32 0.0, %v2168
    %v2276 = vsub.f32 0.0, %v2172
    %v2277 = vsub.f32 0.0, %v2174
    %v2278 = vsub.f32 0.0, %v2176
    %v2279 = vsub.f32 0.0, %v2178
    %v2280 = vsub.f32 0.0, %v2182
    %v2281 = vsub.f32 0.0, %v2184
    %v2282 = vsub.f32 0.0, %v2186
    %v2283 = vsub.f32 0.0, %v2188
    %v2284 = vsub.f32 0.0, %v2192
    %v2285 = vsub.f32 0.0, %v2194
    %v2286 = vsub.f32 0.0, %v2196
    %v2287 = vsub.f32 0.0, %v2198
    %v2288 = vsub.f32 0.0, %v2202
    %v2289 = vsub.f32 0.0, %v2204
    %v2290 = vsub.f32 0.0, %v2206
    %v2291 = vsub.f32 0.0, %v2208
    %v2292 = vsub.f32 0.0, %v2212
    %v2293 = vsub.f32 0.0, %v2214
    %v2294 = vsub.f32 0.0, %v2216
    %v2295 = vsub.f32 0.0, %v2218
    %v2296 = vsub.f32 0.0, %v2222
    %v2297 = vsub.f32 0.0, %v2224
    %v2298 = vsub.f32 0.0, %v2226
    %v2299 = vsub.f32 0.0, %v2228
    %v2300 = vsub.f32 0.0, %v2232
    %v2301 = vsub.f32 0.0, %v2234
    %v2302 = vsub.f32 0.0, %v2236
    %v2303 = vsub.f32 0.0, %v2238
    %v2304 = vsel %vm2240, %v2272, %v2162
    %v2305 = vsel %vm2241, %v2273, %v2164
    %v2306 = vsel %vm2242, %v2274, %v2166
    %v2307 = vsel %vm2243, %v2275, %v2168
    %v2308 = vsel %vm2244, %v2276, %v2172
    %v2309 = vsel %vm2245, %v2277, %v2174
    %v2310 = vsel %vm2246, %v2278, %v2176
    %v2311 = vsel %vm2247, %v2279, %v2178
    %v2312 = vsel %vm2248, %v2280, %v2182
    %v2313 = vsel %vm2249, %v2281, %v2184
    %v2314 = vsel %vm2250, %v2282, %v2186
    %v2315 = vsel %vm2251, %v2283, %v2188
    %v2316 = vsel %vm2252, %v2284, %v2192
    %v2317 = vsel %vm2253, %v2285, %v2194
    %v2318 = vsel %vm2254, %v2286, %v2196
    %v2319 = vsel %vm2255, %v2287, %v2198
    %v2320 = vsel %vm2256, %v2288, %v2202
    %v2321 = vsel %vm2257, %v2289, %v2204
    %v2322 = vsel %vm2258, %v2290, %v2206
    %v2323 = vsel %vm2259, %v2291, %v2208
    %v2324 = vsel %vm2260, %v2292, %v2212
    %v2325 = vsel %vm2261, %v2293, %v2214
    %v2326 = vsel %vm2262, %v2294, %v2216
    %v2327 = vsel %vm2263, %v2295, %v2218
    %v2328 = vsel %vm2264, %v2296, %v2222
    %v2329 = vsel %vm2265, %v2297, %v2224
    %v2330 = vsel %vm2266, %v2298, %v2226
    %v2331 = vsel %vm2267, %v2299, %v2228
    %v2332 = vsel %vm2268, %v2300, %v2232
    %v2333 = vsel %vm2269, %v2301, %v2234
    %v2334 = vsel %vm2270, %v2302, %v2236
    %v2335 = vsel %vm2271, %v2303, %v2238
    %v2336 = vmul.f32 %v2304, 1.442695
    %v2337 = vpow.pop %v2336
    %v2338 = vmul.f32 %v2305, 1.442695
    %v2339 = vpow.pop %v2338
    %v2340 = vmul.f32 %v2306, 1.442695
    %v2341 = vpow.pop %v2340
    %v2342 = vmul.f32 %v2307, 1.442695
    %v2343 = vpow.pop %v2342
    %v2344 = vmul.f32 %v2308, 1.442695
    %v2345 = vpow.pop %v2344
    %v2346 = vmul.f32 %v2309, 1.442695
    %v2347 = vpow.pop %v2346
    %v2348 = vmul.f32 %v2310, 1.442695
    %v2349 = vpow.pop %v2348
    %v2350 = vmul.f32 %v2311, 1.442695
    %v2351 = vpow.pop %v2350
    %v2352 = vmul.f32 %v2312, 1.442695
    %v2353 = vpow.pop %v2352
    %v2354 = vmul.f32 %v2313, 1.442695
    %v2355 = vpow.pop %v2354
    %v2356 = vmul.f32 %v2314, 1.442695
    %v2357 = vpow.pop %v2356
    %v2358 = vmul.f32 %v2315, 1.442695
    %v2359 = vpow.pop %v2358
    %v2360 = vmul.f32 %v2316, 1.442695
    %v2361 = vpow.pop %v2360
    %v2362 = vmul.f32 %v2317, 1.442695
    %v2363 = vpow.pop %v2362
    %v2364 = vmul.f32 %v2318, 1.442695
    %v2365 = vpow.pop %v2364
    %v2366 = vmul.f32 %v2319, 1.442695
    %v2367 = vpow.pop %v2366
    %v2368 = vmul.f32 %v2320, 1.442695
    %v2369 = vpow.pop %v2368
    %v2370 = vmul.f32 %v2321, 1.442695
    %v2371 = vpow.pop %v2370
    %v2372 = vmul.f32 %v2322, 1.442695
    %v2373 = vpow.pop %v2372
    %v2374 = vmul.f32 %v2323, 1.442695
    %v2375 = vpow.pop %v2374
    %v2376 = vmul.f32 %v2324, 1.442695
    %v2377 = vpow.pop %v2376
    %v2378 = vmul.f32 %v2325, 1.442695
    %v2379 = vpow.pop %v2378
    %v2380 = vmul.f32 %v2326, 1.442695
    %v2381 = vpow.pop %v2380
    %v2382 = vmul.f32 %v2327, 1.442695
    %v2383 = vpow.pop %v2382
    %v2384 = vmul.f32 %v2328, 1.442695
    %v2385 = vpow.pop %v2384
    %v2386 = vmul.f32 %v2329, 1.442695
    %v2387 = vpow.pop %v2386
    %v2388 = vmul.f32 %v2330, 1.442695
    %v2389 = vpow.pop %v2388
    %v2390 = vmul.f32 %v2331, 1.442695
    %v2391 = vpow.pop %v2390
    %v2392 = vmul.f32 %v2332, 1.442695
    %v2393 = vpow.pop %v2392
    %v2394 = vmul.f32 %v2333, 1.442695
    %v2395 = vpow.pop %v2394
    %v2396 = vmul.f32 %v2334, 1.442695
    %v2397 = vpow.pop %v2396
    %v2398 = vmul.f32 %v2335, 1.442695
    %v2399 = vpow.pop %v2398
    %v2400 = vadd.f32 %v2337, 1.0
    %v2401 = vadd.f32 %v2339, 1.0
    %v2402 = vadd.f32 %v2341, 1.0
    %v2403 = vadd.f32 %v2343, 1.0
    %v2404 = vadd.f32 %v2345, 1.0
    %v2405 = vadd.f32 %v2347, 1.0
    %v2406 = vadd.f32 %v2349, 1.0
    %v2407 = vadd.f32 %v2351, 1.0
    %v2408 = vadd.f32 %v2353, 1.0
    %v2409 = vadd.f32 %v2355, 1.0
    %v2410 = vadd.f32 %v2357, 1.0
    %v2411 = vadd.f32 %v2359, 1.0
    %v2412 = vadd.f32 %v2361, 1.0
    %v2413 = vadd.f32 %v2363, 1.0
    %v2414 = vadd.f32 %v2365, 1.0
    %v2415 = vadd.f32 %v2367, 1.0
    %v2416 = vadd.f32 %v2369, 1.0
    %v2417 = vadd.f32 %v2371, 1.0
    %v2418 = vadd.f32 %v2373, 1.0
    %v2419 = vadd.f32 %v2375, 1.0
    %v2420 = vadd.f32 %v2377, 1.0
    %v2421 = vadd.f32 %v2379, 1.0
    %v2422 = vadd.f32 %v2381, 1.0
    %v2423 = vadd.f32 %v2383, 1.0
    %v2424 = vadd.f32 %v2385, 1.0
    %v2425 = vadd.f32 %v2387, 1.0
    %v2426 = vadd.f32 %v2389, 1.0
    %v2427 = vadd.f32 %v2391, 1.0
    %v2428 = vadd.f32 %v2393, 1.0
    %v2429 = vadd.f32 %v2395, 1.0
    %v2430 = vadd.f32 %v2397, 1.0
    %v2431 = vadd.f32 %v2399, 1.0
    %v2432 = vrcp.pop %v2400
    %v2433 = vrcp.pop %v2401
    %v2434 = vrcp.pop %v2402
    %v2435 = vrcp.pop %v2403
    %v2436 = vrcp.pop %v2404
    %v2437 = vrcp.pop %v2405
    %v2438 = vrcp.pop %v2406
    %v2439 = vrcp.pop %v2407
    %v2440 = vrcp.pop %v2408
    %v2441 = vrcp.pop %v2409
    %v2442 = vrcp.pop %v2410
    %v2443 = vrcp.pop %v2411
    %v2444 = vrcp.pop %v2412
    %v2445 = vrcp.pop %v2413
    %v2446 = vrcp.pop %v2414
    %v2447 = vrcp.pop %v2415
    %v2448 = vrcp.pop %v2416
    %v2449 = vrcp.pop %v2417
    %v2450 = vrcp.pop %v2418
    %v2451 = vrcp.pop %v2419
    %v2452 = vrcp.pop %v2420
    %v2453 = vrcp.pop %v2421
    %v2454 = vrcp.pop %v2422
    %v2455 = vrcp.pop %v2423
    %v2456 = vrcp.pop %v2424
    %v2457 = vrcp.pop %v2425
    %v2458 = vrcp.pop %v2426
    %v2459 = vrcp.pop %v2427
    %v2460 = vrcp.pop %v2428
    %v2461 = vrcp.pop %v2429
    %v2462 = vrcp.pop %v2430
    %v2463 = vrcp.pop %v2431
    %v2464 = vmul.f32 %v2337, %v2432
    %v2465 = vmul.f32 %v2339, %v2433
    %v2466 = vmul.f32 %v2341, %v2434
    %v2467 = vmul.f32 %v2343, %v2435
    %v2468 = vmul.f32 %v2345, %v2436
    %v2469 = vmul.f32 %v2347, %v2437
    %v2470 = vmul.f32 %v2349, %v2438
    %v2471 = vmul.f32 %v2351, %v2439
    %v2472 = vmul.f32 %v2353, %v2440
    %v2473 = vmul.f32 %v2355, %v2441
    %v2474 = vmul.f32 %v2357, %v2442
    %v2475 = vmul.f32 %v2359, %v2443
    %v2476 = vmul.f32 %v2361, %v2444
    %v2477 = vmul.f32 %v2363, %v2445
    %v2478 = vmul.f32 %v2365, %v2446
    %v2479 = vmul.f32 %v2367, %v2447
    %v2480 = vmul.f32 %v2369, %v2448
    %v2481 = vmul.f32 %v2371, %v2449
    %v2482 = vmul.f32 %v2373, %v2450
    %v2483 = vmul.f32 %v2375, %v2451
    %v2484 = vmul.f32 %v2377, %v2452
    %v2485 = vmul.f32 %v2379, %v2453
    %v2486 = vmul.f32 %v2381, %v2454
    %v2487 = vmul.f32 %v2383, %v2455
    %v2488 = vmul.f32 %v2385, %v2456
    %v2489 = vmul.f32 %v2387, %v2457
    %v2490 = vmul.f32 %v2389, %v2458
    %v2491 = vmul.f32 %v2391, %v2459
    %v2492 = vmul.f32 %v2393, %v2460
    %v2493 = vmul.f32 %v2395, %v2461
    %v2494 = vmul.f32 %v2397, %v2462
    %v2495 = vmul.f32 %v2399, %v2463
    %v2496 = vsel %vm2240, %v2432, %v2464
    %v2497 = vsel %vm2241, %v2433, %v2465
    %v2498 = vsel %vm2242, %v2434, %v2466
    %v2499 = vsel %vm2243, %v2435, %v2467
    %v2500 = vsel %vm2244, %v2436, %v2468
    %v2501 = vsel %vm2245, %v2437, %v2469
    %v2502 = vsel %vm2246, %v2438, %v2470
    %v2503 = vsel %vm2247, %v2439, %v2471
    %v2504 = vsel %vm2248, %v2440, %v2472
    %v2505 = vsel %vm2249, %v2441, %v2473
    %v2506 = vsel %vm2250, %v2442, %v2474
    %v2507 = vsel %vm2251, %v2443, %v2475
    %v2508 = vsel %vm2252, %v2444, %v2476
    %v2509 = vsel %vm2253, %v2445, %v2477
    %v2510 = vsel %vm2254, %v2446, %v2478
    %v2511 = vsel %vm2255, %v2447, %v2479
    %v2512 = vsel %vm2256, %v2448, %v2480
    %v2513 = vsel %vm2257, %v2449, %v2481
    %v2514 = vsel %vm2258, %v2450, %v2482
    %v2515 = vsel %vm2259, %v2451, %v2483
    %v2516 = vsel %vm2260, %v2452, %v2484
    %v2517 = vsel %vm2261, %v2453, %v2485
    %v2518 = vsel %vm2262, %v2454, %v2486
    %v2519 = vsel %vm2263, %v2455, %v2487
    %v2520 = vsel %vm2264, %v2456, %v2488
    %v2521 = vsel %vm2265, %v2457, %v2489
    %v2522 = vsel %vm2266, %v2458, %v2490
    %v2523 = vsel %vm2267, %v2459, %v2491
    %v2524 = vsel %vm2268, %v2460, %v2492
    %v2525 = vsel %vm2269, %v2461, %v2493
    %v2526 = vsel %vm2270, %v2462, %v2494
    %v2527 = vsel %vm2271, %v2463, %v2495
    %v2528 = vld [vmem:[%s3] sm:$0x3]
    %v2530 = vlaneseq
    %v2531 = vshrl.u32 %v2530, 7
    %v2532 = vsub.s32 0, %v2531
    %v2533 = vrot.slane %v2528, %v2532
    %v2534 = vlaneseq
    %v2535 = vshrl.u32 %v2534, 7
    %v2536 = vsub.s32 1, %v2535
    %v2537 = vrot.slane %v2528, %v2536
    %v2540 = vmul.f32 %v2496, %v2533
    %v2541 = vmul.f32 %v2497, %v2537
    %v2542 = vmul.f32 %v2498, %v2533
    %v2543 = vmul.f32 %v2499, %v2537
    %v2544 = vmul.f32 %v2500, %v2533
    %v2545 = vmul.f32 %v2501, %v2537
    %v2546 = vmul.f32 %v2502, %v2533
    %v2547 = vmul.f32 %v2503, %v2537
    %v2548 = vmul.f32 %v2504, %v2533
    %v2549 = vmul.f32 %v2505, %v2537
    %v2550 = vmul.f32 %v2506, %v2533
    %v2551 = vmul.f32 %v2507, %v2537
    %v2552 = vmul.f32 %v2508, %v2533
    %v2553 = vmul.f32 %v2509, %v2537
    %v2554 = vmul.f32 %v2510, %v2533
    %v2555 = vmul.f32 %v2511, %v2537
    %v2556 = vmul.f32 %v2512, %v2533
    %v2557 = vmul.f32 %v2513, %v2537
    %v2558 = vmul.f32 %v2514, %v2533
    %v2559 = vmul.f32 %v2515, %v2537
    %v2560 = vmul.f32 %v2516, %v2533
    %v2561 = vmul.f32 %v2517, %v2537
    %v2562 = vmul.f32 %v2518, %v2533
    %v2563 = vmul.f32 %v2519, %v2537
    %v2564 = vmul.f32 %v2520, %v2533
    %v2565 = vmul.f32 %v2521, %v2537
    %v2566 = vmul.f32 %v2522, %v2533
    %v2567 = vmul.f32 %v2523, %v2537
    %v2568 = vmul.f32 %v2524, %v2533
    %v2569 = vmul.f32 %v2525, %v2537
    %v2570 = vmul.f32 %v2526, %v2533
    %v2571 = vmul.f32 %v2527, %v2537
    %v2572 = vadd.f32 %v2540, %v2541
    %2573 = vadd.xlane.f32.xlu0 %v2572
    %v2574 = vpop.xlane.xlu0 %2573
    %v2575 = vadd.f32 %v2542, %v2543
    %2576 = vadd.xlane.f32.xlu0 %v2575
    %v2577 = vpop.xlane.xlu0 %2576
    %v2578 = vadd.f32 %v2544, %v2545
    %2579 = vadd.xlane.f32.xlu0 %v2578
    %v2580 = vpop.xlane.xlu0 %2579
    %v2581 = vadd.f32 %v2546, %v2547
    %2582 = vadd.xlane.f32.xlu0 %v2581
    %v2583 = vpop.xlane.xlu0 %2582
    %v2584 = vadd.f32 %v2548, %v2549
    %2585 = vadd.xlane.f32.xlu0 %v2584
    %v2586 = vpop.xlane.xlu0 %2585
    %v2587 = vadd.f32 %v2550, %v2551
    %2588 = vadd.xlane.f32.xlu0 %v2587
    %v2589 = vpop.xlane.xlu0 %2588
    %v2590 = vadd.f32 %v2552, %v2553
    %2591 = vadd.xlane.f32.xlu0 %v2590
    %v2592 = vpop.xlane.xlu0 %2591
    %v2593 = vadd.f32 %v2554, %v2555
    %2594 = vadd.xlane.f32.xlu0 %v2593
    %v2595 = vpop.xlane.xlu0 %2594
    %v2596 = vadd.f32 %v2556, %v2557
    %2597 = vadd.xlane.f32.xlu0 %v2596
    %v2598 = vpop.xlane.xlu0 %2597
    %v2599 = vadd.f32 %v2558, %v2559
    %2600 = vadd.xlane.f32.xlu0 %v2599
    %v2601 = vpop.xlane.xlu0 %2600
    %v2602 = vadd.f32 %v2560, %v2561
    %2603 = vadd.xlane.f32.xlu0 %v2602
    %v2604 = vpop.xlane.xlu0 %2603
    %v2605 = vadd.f32 %v2562, %v2563
    %2606 = vadd.xlane.f32.xlu0 %v2605
    %v2607 = vpop.xlane.xlu0 %2606
    %v2608 = vadd.f32 %v2564, %v2565
    %2609 = vadd.xlane.f32.xlu0 %v2608
    %v2610 = vpop.xlane.xlu0 %2609
    %v2611 = vadd.f32 %v2566, %v2567
    %2612 = vadd.xlane.f32.xlu0 %v2611
    %v2613 = vpop.xlane.xlu0 %2612
    %v2614 = vadd.f32 %v2568, %v2569
    %2615 = vadd.xlane.f32.xlu0 %v2614
    %v2616 = vpop.xlane.xlu0 %2615
    %v2617 = vadd.f32 %v2570, %v2571
    %2618 = vadd.xlane.f32.xlu0 %v2617
    %v2619 = vpop.xlane.xlu0 %2618
    %s2620 = sld [smem:[#allocation2]]
    %v2621 = vstv %s2620
    %v2622 = vadd.f32 %v2574, %v2621
    %v2623 = vadd.f32 %v2577, %v2621
    %v2624 = vadd.f32 %v2580, %v2621
    %v2625 = vadd.f32 %v2583, %v2621
    %v2626 = vadd.f32 %v2586, %v2621
    %v2627 = vadd.f32 %v2589, %v2621
    %v2628 = vadd.f32 %v2592, %v2621
    %v2629 = vadd.f32 %v2595, %v2621
    %v2630 = vadd.f32 %v2598, %v2621
    %v2631 = vadd.f32 %v2601, %v2621
    %v2632 = vadd.f32 %v2604, %v2621
    %v2633 = vadd.f32 %v2607, %v2621
    %v2634 = vadd.f32 %v2610, %v2621
    %v2635 = vadd.f32 %v2613, %v2621
    %v2636 = vadd.f32 %v2616, %v2621
    %v2637 = vadd.f32 %v2619, %v2621
    %vm2638 = vcmask 7168
    %2639 = vst.msk [vmem:[#allocation7] sm:$0xff] %vm2638, %v2622
    %2640 = vst.msk [vmem:[#allocation7 + $0x8] sm:$0xff] %vm2638, %v2623
    %2641 = vst.msk [vmem:[#allocation7 + $0x10] sm:$0xff] %vm2638, %v2624
    %2642 = vst.msk [vmem:[#allocation7 + $0x18] sm:$0xff] %vm2638, %v2625
    %2643 = vst.msk [vmem:[#allocation7 + $0x20] sm:$0xff] %vm2638, %v2626
    %2644 = vst.msk [vmem:[#allocation7 + $0x28] sm:$0xff] %vm2638, %v2627
    %2645 = vst.msk [vmem:[#allocation7 + $0x30] sm:$0xff] %vm2638, %v2628
    %2646 = vst.msk [vmem:[#allocation7 + $0x38] sm:$0xff] %vm2638, %v2629
    %2647 = vst.msk [vmem:[#allocation7 + $0x40] sm:$0xff] %vm2638, %v2630
    %2648 = vst.msk [vmem:[#allocation7 + $0x48] sm:$0xff] %vm2638, %v2631
    %2649 = vst.msk [vmem:[#allocation7 + $0x50] sm:$0xff] %vm2638, %v2632
    %2650 = vst.msk [vmem:[#allocation7 + $0x58] sm:$0xff] %vm2638, %v2633
    %2651 = vst.msk [vmem:[#allocation7 + $0x60] sm:$0xff] %vm2638, %v2634
    %2652 = vst.msk [vmem:[#allocation7 + $0x68] sm:$0xff] %vm2638, %v2635
    %2653 = vst.msk [vmem:[#allocation7 + $0x70] sm:$0xff] %vm2638, %v2636
    %2654 = vst.msk [vmem:[#allocation7 + $0x78] sm:$0xff] %vm2638, %v2637
    // Predicated region
    $region30: #{tpu_custom_call.1} parent=1 // pred_check
      _
    $region31: #{tpu_custom_call.1} parent=1 // pred_check_branch
      %2656 = sbr.rel (0) target = $region33
    $region32: #{tpu_custom_call.1} parent=1 // pred_region
      // Predicated region
      $region34: #{tpu_custom_call.1} parent=32 // pred_check
        _
      $region35: #{tpu_custom_call.1} parent=32 // pred_check_branch
        %2658 = sbr.rel (0) target = $region37
      $region36: #{tpu_custom_call.1} parent=32 // pred_region
        // Predicated region
        $region38: #{tpu_custom_call.1} parent=36 // pred_check
          _
        $region39: #{tpu_custom_call.1} parent=36 // pred_check_branch
          %2660 = sbr.rel target = $region41
        $region40: #{tpu_custom_call.1} parent=36 // pred_region
          // Predicated region
          $region53: #{tpu_custom_call.1} parent=40 // pred_check
            _
          $region54: #{tpu_custom_call.1} parent=40 // pred_check_branch
            %2676 = sbr.rel (0) target = $region56
          $region55: #{tpu_custom_call.1} parent=40 // pred_region
            %s2678 = ssub.s32 4, 1
            loop: start=0, step=1, limit=1
            $region57: #{tpu_custom_call.1} parent=55 // loop_pre_header
              _
            $region58: #{tpu_custom_call.1} parent=55 // loop_header
              %s2680 = sphi 0, %s2684
              %p2681 = scmp.ge.s32.totalorder %s2680, 1
              %s2685 = sphi [#allocation7], [#allocation7]
              %s2686 = sphi %s5, %s5
            $region59: #{tpu_custom_call.1} parent=55 // loop_header_branch
              %2683 = sbr.rel (%p2681) target = $region63
            $region60: #{tpu_custom_call.1} parent=55 // loop_body
              %v2687 = vld [vmem:[%s2685] sm:%s2678]
              %2688 = vst [vmem:[%s2686] sm:%s2678] %v2687
            $region61: #{tpu_custom_call.1} parent=55 // loop_footer
              %s2684 = sadd.s32 1, %s2680
            $region62: #{tpu_custom_call.1} parent=55 // loop_footer_branch
              %2679 = sbr.rel target = $region58
            $region63: #{tpu_custom_call.1} parent=55 // loop_exit
              _
          $region56: #{tpu_custom_call.1} parent=40 // pred_fallthru
            _
        $region41: #{tpu_custom_call.1} parent=36 // pred_fallthru
          _
        // Predicated region
        $region42: #{tpu_custom_call.1} parent=36 // pred_check
          _
        $region43: #{tpu_custom_call.1} parent=36 // pred_check_branch
          %2662 = sbr.rel (0) target = $region45
        $region44: #{tpu_custom_call.1} parent=36 // pred_region
          %s2664 = ssub.s32 4, 1
          loop: start=0, step=1, limit=1
          $region46: #{tpu_custom_call.1} parent=44 // loop_pre_header
            _
          $region47: #{tpu_custom_call.1} parent=44 // loop_header
            %s2666 = sphi 0, %s2670
            %p2667 = scmp.ge.s32.totalorder %s2666, 1
            %s2671 = sphi [#allocation7], [#allocation7]
            %s2672 = sphi %s5, %s5
          $region48: #{tpu_custom_call.1} parent=44 // loop_header_branch
            %2669 = sbr.rel (%p2667) target = $region52
          $region49: #{tpu_custom_call.1} parent=44 // loop_body
            %v2673 = vld [vmem:[%s2671] sm:%s2664]
            %2674 = vst [vmem:[%s2672] sm:%s2664] %v2673
          $region50: #{tpu_custom_call.1} parent=44 // loop_footer
            %s2670 = sadd.s32 1, %s2666
          $region51: #{tpu_custom_call.1} parent=44 // loop_footer_branch
            %2665 = sbr.rel target = $region47
          $region52: #{tpu_custom_call.1} parent=44 // loop_exit
            _
        $region45: #{tpu_custom_call.1} parent=36 // pred_fallthru
          _
      $region37: #{tpu_custom_call.1} parent=32 // pred_fallthru
        _
      %2689 = vnop
    $region33: #{tpu_custom_call.1} parent=1 // pred_fallthru
      _
    // Predicated region
    $region64: #{tpu_custom_call.1} parent=1 // pred_check
      _
    $region65: #{tpu_custom_call.1} parent=1 // pred_check_branch
      %2691 = sbr.rel (0) target = $region67
    $region66: #{tpu_custom_call.1} parent=1 // pred_region
      _
    $region67: #{tpu_custom_call.1} parent=1 // pred_fallthru
      _
    %2692 = vsyncpa [#allocation4], 1
    %2693 = vsyncpa [#allocation6], 1

</llo_original>
